<compile_context>
chip_gen: v7x
topology: tpu7x:2x2x1
jax: 0.10.0
libtpu: 0.0.40
codegen_flags: <defaults>
</compile_context>

<pallas_src>
import functools

import jax
import jax.numpy as jnp
from jax.experimental import pallas as pl
from jax.experimental.pallas import tpu as pltpu


KMAX = 15                       # largest conv kernel (cnn3)
PMAX = (KMAX - 1) // 2          # shared "same" padding = 7
CONV_OUT = 256 + 128 + 64       # 448 real combined conv output channels
CONV_PAD = 512                  # lane-dense padded conv channels
GLOBAL_OUT = 576
FC1_IN = GLOBAL_OUT + CONV_OUT  # 1024
FC1_OUT = 512
FC2_OUT = 256
OUT_PAD = 128                   # fc3 output padded to one full lane (>= 53)

# Packed bias slab layout — every offset is a multiple of 128 (lane-aligned).
_B_OFF_CONV = 0
_B_OFF_FC1 = _B_OFF_CONV + CONV_PAD       # 512
_B_OFF_FC2 = _B_OFF_FC1 + FC1_OUT         # 1024
_B_OFF_FC3 = _B_OFF_FC2 + FC2_OUT         # 1280
_B_TOTAL = _B_OFF_FC3 + OUT_PAD           # 1408


# --------------------------------------------------------------------------
# Fused Pallas kernel (runs once, everything resident in VMEM)
# --------------------------------------------------------------------------

def _fused_kernel(gf_ref, cols_ref, pool_ref,
                  wc_ref, wgf_ref, w1b_ref, w2_ref, w3_ref,
                  bias_ref, o_ref):
    f32 = jnp.float32
    bf16 = jnp.bfloat16

    # Static, 128-aligned lane slices of the packed bias slab (f32).
    bc = bias_ref[:, _B_OFF_CONV:_B_OFF_FC1]     # (1, 512) conv bias (padded)
    b1 = bias_ref[:, _B_OFF_FC1:_B_OFF_FC2]      # (1, 512) fc1 bias (+ bg@w1a fold)
    b2 = bias_ref[:, _B_OFF_FC2:_B_OFF_FC3]      # (1, 256) fc2 bias (+ BN fold)
    b3 = bias_ref[:, _B_OFF_FC3:_B_TOTAL]        # (1, 128) fc3 bias (padded)

    # ---- three Conv1d branches as ONE im2col MXU matmul --------------------
    # cols: (Bp*L, KC_PAD) bf16 @ wc: (KC_PAD, 512) bf16 -> f32 (Bp*L, 512)
    y = jnp.dot(cols_ref[...], wc_ref[...], preferred_element_type=f32) + bc
    y = jnp.maximum(y, 0.0)                                        # ReLU
    # AdaptiveAvgPool1d(1) == temporal mean, as an MXU matmul with the
    # (Bp, Bp*L) pooling matrix (1/L on each batch's own timesteps).
    conv = jnp.dot(pool_ref[...], y.astype(bf16),
                   preferred_element_type=f32)                     # (Bp, 512)

    # ---- fc1 (global branch folded into wgf) + ReLU ------------------------
    # concat([gf@Wg, conv]) @ W1 == gf @ (Wg@W1a) + conv @ W1b  (exact).
    h = (jnp.dot(gf_ref[...], wgf_ref[...], preferred_element_type=f32)
         + jnp.dot(conv.astype(bf16), w1b_ref[...], preferred_element_type=f32)
         + b1)
    h = jnp.maximum(h, 0.0)
    # BatchNorm1d(eval) + Dropout(id) are folded into w2/b2 below.

    # ---- fc2 (BN folded in) + ReLU + Dropout(id) ----------------------------
    h = jnp.dot(h.astype(bf16), w2_ref[...], preferred_element_type=f32) + b2
    h = jnp.maximum(h, 0.0)

    # ---- fc3: Linear(256 -> num_classes), columns padded to 128 lanes -------
    o_ref[...] = (jnp.dot(h.astype(bf16), w3_ref[...],
                          preferred_element_type=f32) + b3).astype(o_ref.dtype)


# --------------------------------------------------------------------------
# One-time parameter repacking into kernel-ready tensors
# --------------------------------------------------------------------------

def prepare_fused_params(params, num_classes=53):
    f32 = jnp.float32
    bf16 = jnp.bfloat16
    C = params['cnn1_w'].shape[1]
    KC = KMAX * C
    KC_PAD = ((KC + 127) // 128) * 128

    # Combined conv weight: (KMAX, C, 448) with each branch placed at the tap
    # offsets of the shared max-K frame (offset = PMAX - pad_branch + k),
    # zero elsewhere -> one (KC_PAD, 512) matmul reproduces all three convs.
    w_eff = jnp.zeros((KMAX, C, CONV_OUT), f32)
    w_eff = w_eff.at[PMAX - 2: PMAX - 2 + 5, :, 0:256].set(params['cnn1_w'].astype(f32))
    w_eff = w_eff.at[PMAX - 4: PMAX - 4 + 9, :, 256:384].set(params['cnn2_w'].astype(f32))
    w_eff = w_eff.at[PMAX - 7: PMAX - 7 + 15, :, 384:448].set(params['cnn3_w'].astype(f32))
    wc = jnp.zeros((KC_PAD, CONV_PAD), f32).at[:KC, :CONV_OUT].set(
        w_eff.reshape(KC, CONV_OUT))
    bc = jnp.zeros((CONV_PAD,), f32).at[:CONV_OUT].set(
        jnp.concatenate([params['cnn1_b'].reshape(-1),
                         params['cnn2_b'].reshape(-1),
                         params['cnn3_b'].reshape(-1)]).astype(f32))

    # fc1 split rows + global-branch algebraic fold (exact, no activation).
    w1a = params['fc1_w'][:GLOBAL_OUT].astype(f32)          # rows for global 576
    w1b = params['fc1_w'][GLOBAL_OUT:].astype(f32)          # rows for conv 448
    wgf = jnp.dot(params['global_fc_w'].astype(f32), w1a)   # (global_dim, 512)
    b1 = params['fc1_b'].astype(f32) + jnp.dot(
        params['global_fc_b'].astype(f32), w1a)             # (512,)
    w1b_pad = jnp.zeros((CONV_PAD, FC1_OUT), f32).at[:CONV_OUT].set(w1b)

    # Eval-mode BatchNorm1d folded into fc2 (BN sits right before fc2's Linear).
    s1 = params['bn_gamma'] / jnp.sqrt(params['bn_var'] + 1e-5)
    t1 = params['bn_beta'] - params['bn_mean'] * s1
    w2 = s1[:, None].astype(f32) * params['fc2_w'].astype(f32)
    b2 = params['fc2_b'].astype(f32) + jnp.dot(t1.astype(f32),
                                               params['fc2_w'].astype(f32))

    # fc3 padded to a dense 128-lane output slab (sliced back in the wrapper).
    w3 = jnp.zeros((FC2_OUT, OUT_PAD), f32).at[:, :num_classes].set(
        params['fc3_w'].astype(f32))
    b3 = jnp.zeros((OUT_PAD,), f32).at[:num_classes].set(params['fc3_b'].astype(f32))

    biases = jnp.concatenate([bc, b1, b2, b3]).reshape(1, _B_TOTAL).astype(f32)

    return {
        'wc': wc.astype(bf16),
        'wgf': wgf.astype(bf16),
        'w1b': w1b_pad.astype(bf16),
        'w2': w2.astype(bf16),
        'w3': w3.astype(bf16),
        'biases': biases,
    }


# --------------------------------------------------------------------------
# Forward pass: tiny XLA input glue + one fused pallas_call
# --------------------------------------------------------------------------

@functools.partial(jax.jit, static_argnames=('num_classes',))
def global_local_network(fused, global_features, local_features, mask=None,
                         *, num_classes=53):
    f32 = jnp.float32
    bf16 = jnp.bfloat16
    B, L, C = local_features.shape
    Bp = max(8, ((B + 7) // 8) * 8)            # sublane-dense batch
    KC = KMAX * C
    KC_PAD = ((KC + 127) // 128) * 128

    x = local_features.astype(f32)
    if mask is not None:
        x = x * mask.astype(f32)[:, :, None]

    gf = jnp.pad(global_features.astype(f32), ((0, Bp - B), (0, 0))).astype(bf16)

    # Single shared zero-pad (max pad = 7) + im2col for all three branches,
    # last dim padded 120 -> 128 for lane-dense loads.
    xp = jnp.pad(x, ((0, Bp - B), (PMAX, PMAX), (0, 0)))           # (Bp, L+14, C)
    cols = jnp.stack([xp[:, k:k + L, :] for k in range(KMAX)], axis=2)
    cols = cols.reshape(Bp * L, KC)
    cols = jnp.pad(cols, ((0, 0), (0, KC_PAD - KC))).astype(bf16)  # (Bp*L, KC_PAD)

    # Temporal-mean pooling matrix (Bp, Bp*L): 1/L on each batch's timesteps.
    # (Compile-time constant inside the jit — no runtime cost.)
    b_idx = jnp.arange(Bp, dtype=jnp.int32)[:, None]
    t_idx = jnp.arange(Bp * L, dtype=jnp.int32)[None, :]
    pool = jnp.where(t_idx // L == b_idx, 1.0 / L, 0.0).astype(bf16)

    vmem = pl.BlockSpec(memory_space=pltpu.MemorySpace.VMEM)
    out = pl.pallas_call(
        _fused_kernel,
        out_shape=jax.ShapeDtypeStruct((Bp, OUT_PAD), f32),
        in_specs=[vmem] * 9,
        out_specs=vmem,
    )(gf, cols, pool,
      fused['wc'], fused['wgf'], fused['w1b'], fused['w2'], fused['w3'],
      fused['biases'])

    return out[:B, :num_classes]


# --------------------------------------------------------------------------
# Deterministic parameter init (PyTorch-like uniform bounds)
# --------------------------------------------------------------------------

def init_params(key, global_dim, local_dim, num_classes=53):
    ks = jax.random.split(key, 8)

    def lin(k, fan_in, fan_out):
        bound = fan_in ** -0.5
        kw, kb = jax.random.split(k)
        w = jax.random.uniform(kw, (fan_in, fan_out), jnp.float32, -bound, bound)
        b = jax.random.uniform(kb, (fan_out,), jnp.float32, -bound, bound)
        return w, b

    def conv(k, cin, cout, ksize):
        bound = (cin * ksize) ** -0.5
        kw, kb = jax.random.split(k)
        w = jax.random.uniform(kw, (ksize, cin, cout), jnp.float32, -bound, bound)
        b = jax.random.uniform(kb, (1, cout), jnp.float32, -bound, bound)
        return w, b

    p = {}
    p['global_fc_w'], p['global_fc_b'] = lin(ks[0], global_dim, GLOBAL_OUT)
    p['cnn1_w'], p['cnn1_b'] = conv(ks[1], local_dim, 256, 5)
    p['cnn2_w'], p['cnn2_b'] = conv(ks[2], local_dim, 128, 9)
    p['cnn3_w'], p['cnn3_b'] = conv(ks[3], local_dim, 64, 15)
    p['fc1_w'], p['fc1_b'] = lin(ks[4], FC1_IN, FC1_OUT)
    p['fc2_w'], p['fc2_b'] = lin(ks[5], FC1_OUT, FC2_OUT)
    p['fc3_w'], p['fc3_b'] = lin(ks[6], FC2_OUT, num_classes)
    p['bn_gamma'] = jnp.ones((FC1_OUT,), jnp.float32)
    p['bn_beta'] = jnp.zeros((FC1_OUT,), jnp.float32)
    p['bn_mean'] = jnp.zeros((FC1_OUT,), jnp.float32)
    p['bn_var'] = jnp.ones((FC1_OUT,), jnp.float32)
    return p


# --------------------------------------------------------------------------
# Pure-JAX f32 reference (for validation)
# --------------------------------------------------------------------------

def ref_forward(params, gf, lf, mask=None):
    P = jax.lax.Precision.HIGHEST
    g = jnp.dot(gf, params['global_fc_w'], precision=P) + params['global_fc_b'][None, :]
    x = lf if mask is None else lf * mask[:, :, None]
    outs = [g]
    for name in ('cnn1', 'cnn2', 'cnn3'):
        w, b = params[name + '_w'], params[name + '_b']
        K = w.shape[0]
        pad = (K - 1) // 2
        xp = jnp.pad(x, ((0, 0), (pad, pad), (0, 0)))
        L = x.shape[1]
        cols = jnp.stack([xp[:, k:k + L, :] for k in range(K)], axis=2)  # (B,L,K,C)
        y = jnp.einsum('blkc,kco->blo', cols, w, precision=P) + b.reshape(1, 1, -1)
        outs.append(jnp.mean(jnp.maximum(y, 0.0), axis=1))
    c = jnp.concatenate(outs, axis=1)
    bn_scale = params['bn_gamma'] / jnp.sqrt(params['bn_var'] + 1e-5)
    bn_shift = params['bn_beta'] - params['bn_mean'] * bn_scale
    h = jnp.maximum(jnp.dot(c, params['fc1_w'], precision=P) + params['fc1_b'][None, :], 0.0)
    h = h * bn_scale[None, :] + bn_shift[None, :]
    h = jnp.maximum(jnp.dot(h, params['fc2_w'], precision=P) + params['fc2_b'][None, :], 0.0)
    return jnp.dot(h, params['fc3_w'], precision=P) + params['fc3_b'][None, :]


# --------------------------------------------------------------------------

if __name__ == "__main__":
    B, GLOBAL_DIM, LOCAL_DIM, SEQ_LEN, NUM_CLASSES = 2, 32, 8, 16, 53

    key = jax.random.PRNGKey(0)
    k_p, k_g, k_l = jax.random.split(key, 3)
    params = init_params(k_p, GLOBAL_DIM, LOCAL_DIM, NUM_CLASSES)
    fused = prepare_fused_params(params, NUM_CLASSES)

    global_features = jax.random.normal(k_g, (B, GLOBAL_DIM), jnp.float32)
    local_features = jax.random.normal(k_l, (B, SEQ_LEN, LOCAL_DIM), jnp.float32)
    # simple mask: last 4 timesteps masked out
    mask = jnp.concatenate(
        [jnp.ones((B, SEQ_LEN - 4), jnp.float32), jnp.zeros((B, 4), jnp.float32)], axis=1)

    out = global_local_network(fused, global_features, local_features, mask,
                               num_classes=NUM_CLASSES)
    out = jax.block_until_ready(out)
    assert out.shape == (B, NUM_CLASSES) and out.dtype == jnp.float32

    ref = jax.block_until_ready(ref_forward(params, global_features, local_features, mask))
    assert jnp.allclose(out, ref, atol=2e-2, rtol=2e-2), (
        f"max abs diff {jnp.max(jnp.abs(out - ref))}")

    print("KERNEL_OK")
</pallas_src>

<mosaic_0001>
module attributes {stable_mosaic.version = 11 : i64} {
  func.func @_fused_kernel(%arg0: memref<8x32xbf16, #tpu.memory_space<vmem>>, %arg1: memref<128x128xbf16, #tpu.memory_space<vmem>>, %arg2: memref<8x128xbf16, #tpu.memory_space<vmem>>, %arg3: memref<128x512xbf16, #tpu.memory_space<vmem>>, %arg4: memref<32x512xbf16, #tpu.memory_space<vmem>>, %arg5: memref<512x512xbf16, #tpu.memory_space<vmem>>, %arg6: memref<512x256xbf16, #tpu.memory_space<vmem>>, %arg7: memref<256x128xbf16, #tpu.memory_space<vmem>>, %arg8: memref<1x1408xf32, #tpu.memory_space<vmem>>, %arg9: memref<8x128xf32, #tpu.memory_space<vmem>>) attributes {dimension_semantics = [], scalar_prefetch = 0 : i64, scratch_operands = 0 : i64, tpu.core_type = #tpu.core_type<tc>} {
    %c0 = arith.constant 0 : index
    %c0_0 = arith.constant 0 : index
    %0 = vector.load %arg8[%c0, %c0_0] : memref<1x1408xf32, #tpu.memory_space<vmem>>, vector<1x512xf32>
    %c0_1 = arith.constant 0 : index
    %c512 = arith.constant 512 : index
    %1 = vector.load %arg8[%c0_1, %c512] : memref<1x1408xf32, #tpu.memory_space<vmem>>, vector<1x512xf32>
    %c0_2 = arith.constant 0 : index
    %c1024 = arith.constant 1024 : index
    %2 = vector.load %arg8[%c0_2, %c1024] : memref<1x1408xf32, #tpu.memory_space<vmem>>, vector<1x256xf32>
    %c0_3 = arith.constant 0 : index
    %c1280 = arith.constant 1280 : index
    %3 = vector.load %arg8[%c0_3, %c1280] : memref<1x1408xf32, #tpu.memory_space<vmem>>, vector<1x128xf32>
    %c0_4 = arith.constant 0 : index
    %c0_5 = arith.constant 0 : index
    %4 = vector.load %arg1[%c0_4, %c0_5] : memref<128x128xbf16, #tpu.memory_space<vmem>>, vector<128x128xbf16>
    %c0_6 = arith.constant 0 : index
    %c0_7 = arith.constant 0 : index
    %5 = vector.load %arg3[%c0_6, %c0_7] : memref<128x512xbf16, #tpu.memory_space<vmem>>, vector<128x512xbf16>
    %cst = arith.constant dense<0.000000e+00> : vector<128x512xf32>
    %6 = tpu.matmul %4, %5, %cst {dimension_numbers = #tpu.dot_dimension_numbers<[1], [0], [0], [1], [0, 0, 1, 1], [], []>} : vector<128x128xbf16>, vector<128x512xbf16>, vector<128x512xf32> -> vector<128x512xf32>
    %7 = vector.broadcast %0 : vector<1x512xf32> to vector<128x512xf32>
    %8 = arith.addf %6, %7 : vector<128x512xf32>
    %cst_8 = arith.constant 0.000000e+00 : f32
    %9 = vector.broadcast %cst_8 : f32 to vector<128x512xf32>
    %10 = arith.maximumf %8, %9 : vector<128x512xf32>
    %c0_9 = arith.constant 0 : index
    %c0_10 = arith.constant 0 : index
    %11 = vector.load %arg2[%c0_9, %c0_10] : memref<8x128xbf16, #tpu.memory_space<vmem>>, vector<8x128xbf16>
    %12 = arith.truncf %10 : vector<128x512xf32> to vector<128x512xbf16>
    %cst_11 = arith.constant dense<0.000000e+00> : vector<8x512xf32>
    %13 = tpu.matmul %11, %12, %cst_11 {dimension_numbers = #tpu.dot_dimension_numbers<[1], [0], [0], [1], [0, 0, 1, 1], [], []>} : vector<8x128xbf16>, vector<128x512xbf16>, vector<8x512xf32> -> vector<8x512xf32>
    %c0_12 = arith.constant 0 : index
    %c0_13 = arith.constant 0 : index
    %14 = vector.load %arg0[%c0_12, %c0_13] : memref<8x32xbf16, #tpu.memory_space<vmem>>, vector<8x32xbf16>
    %c0_14 = arith.constant 0 : index
    %c0_15 = arith.constant 0 : index
    %15 = vector.load %arg4[%c0_14, %c0_15] : memref<32x512xbf16, #tpu.memory_space<vmem>>, vector<32x512xbf16>
    %cst_16 = arith.constant dense<0.000000e+00> : vector<8x512xf32>
    %16 = tpu.matmul %14, %15, %cst_16 {dimension_numbers = #tpu.dot_dimension_numbers<[1], [0], [0], [1], [0, 0, 1, 1], [], []>} : vector<8x32xbf16>, vector<32x512xbf16>, vector<8x512xf32> -> vector<8x512xf32>
    %17 = arith.truncf %13 : vector<8x512xf32> to vector<8x512xbf16>
    %c0_17 = arith.constant 0 : index
    %c0_18 = arith.constant 0 : index
    %18 = vector.load %arg5[%c0_17, %c0_18] : memref<512x512xbf16, #tpu.memory_space<vmem>>, vector<512x512xbf16>
    %cst_19 = arith.constant dense<0.000000e+00> : vector<8x512xf32>
    %19 = tpu.matmul %17, %18, %cst_19 {dimension_numbers = #tpu.dot_dimension_numbers<[1], [0], [0], [1], [0, 0, 1, 1], [], []>} : vector<8x512xbf16>, vector<512x512xbf16>, vector<8x512xf32> -> vector<8x512xf32>
    %20 = arith.addf %16, %19 : vector<8x512xf32>
    %21 = vector.broadcast %1 : vector<1x512xf32> to vector<8x512xf32>
    %22 = arith.addf %20, %21 : vector<8x512xf32>
    %cst_20 = arith.constant 0.000000e+00 : f32
    %23 = vector.broadcast %cst_20 : f32 to vector<8x512xf32>
    %24 = arith.maximumf %22, %23 : vector<8x512xf32>
    %25 = arith.truncf %24 : vector<8x512xf32> to vector<8x512xbf16>
    %c0_21 = arith.constant 0 : index
    %c0_22 = arith.constant 0 : index
    %26 = vector.load %arg6[%c0_21, %c0_22] : memref<512x256xbf16, #tpu.memory_space<vmem>>, vector<512x256xbf16>
    %cst_23 = arith.constant dense<0.000000e+00> : vector<8x256xf32>
    %27 = tpu.matmul %25, %26, %cst_23 {dimension_numbers = #tpu.dot_dimension_numbers<[1], [0], [0], [1], [0, 0, 1, 1], [], []>} : vector<8x512xbf16>, vector<512x256xbf16>, vector<8x256xf32> -> vector<8x256xf32>
    %28 = vector.broadcast %2 : vector<1x256xf32> to vector<8x256xf32>
    %29 = arith.addf %27, %28 : vector<8x256xf32>
    %cst_24 = arith.constant 0.000000e+00 : f32
    %30 = vector.broadcast %cst_24 : f32 to vector<8x256xf32>
    %31 = arith.maximumf %29, %30 : vector<8x256xf32>
    %32 = arith.truncf %31 : vector<8x256xf32> to vector<8x256xbf16>
    %c0_25 = arith.constant 0 : index
    %c0_26 = arith.constant 0 : index
    %33 = vector.load %arg7[%c0_25, %c0_26] : memref<256x128xbf16, #tpu.memory_space<vmem>>, vector<256x128xbf16>
    %cst_27 = arith.constant dense<0.000000e+00> : vector<8x128xf32>
    %34 = tpu.matmul %32, %33, %cst_27 {dimension_numbers = #tpu.dot_dimension_numbers<[1], [0], [0], [1], [0, 0, 1, 1], [], []>} : vector<8x256xbf16>, vector<256x128xbf16>, vector<8x128xf32> -> vector<8x128xf32>
    %35 = vector.broadcast %3 : vector<1x128xf32> to vector<8x128xf32>
    %36 = arith.addf %34, %35 : vector<8x128xf32>
    %c0_28 = arith.constant 0 : index
    %c0_29 = arith.constant 0 : index
    %37 = vector.load %arg9[%c0_28, %c0_29] : memref<8x128xf32, #tpu.memory_space<vmem>>, vector<8x128xf32>
    tpu.vector_store %arg9[%c0_28, %c0_29], %36 {strides = array<i32>} : memref<8x128xf32, #tpu.memory_space<vmem>>, vector<8x128xf32>,
    return
  }
}

</mosaic_0001>

<llo_original>
// kernel: global_local_network.1
$region0: #{global_local_network.1}
  #allocation0 [shape = 'u32[]', space=smem, size = 0x4, offset = 0x4, fixed_abs, tag = 'smem constant byte address 0x4 - core index']
  #allocation1 [shape = 'u32[144,128]{1,0:T(1,128)}', space=vmem, size = 0x12000, scoped, tag = 'internal scratch']
  %s0 = inlined_call_operand.vmem [shape: bf16[8,32], index: 0, kind: input, shape index: {}]
  %s1 = inlined_call_operand.vmem [shape: bf16[128,128], index: 1, kind: input, shape index: {}]
  %s2 = inlined_call_operand.vmem [shape: bf16[8,128], index: 2, kind: input, shape index: {}]
  %s3 = inlined_call_operand.vmem [shape: bf16[128,512], index: 3, kind: input, shape index: {}]
  %s4 = inlined_call_operand.vmem [shape: bf16[32,512], index: 4, kind: input, shape index: {}]
  %s5 = inlined_call_operand.vmem [shape: bf16[512,512], index: 5, kind: input, shape index: {}]
  %s6 = inlined_call_operand.vmem [shape: bf16[512,256], index: 6, kind: input, shape index: {}]
  %s7 = inlined_call_operand.vmem [shape: bf16[256,128], index: 7, kind: input, shape index: {}]
  %s8 = inlined_call_operand.vmem [shape: f32[1,1408], index: 8, kind: input, shape index: {}]
  %s9 = inlined_call_operand.vmem [shape: f32[8,128], index: 9, kind: output, shape index: {}]
  %s10 = sld [smem:[#allocation0]]
  $region46: #{global_local_network.1} parent=0
    _
  %s12 = ssub.s32 1, %s10
  %s13 = scalar_select 0, %s12, %s10
  // Predicated region
  $region2: #{global_local_network.1} parent=0 // pred_check
    _
  $region3: #{global_local_network.1} parent=0 // pred_check_branch
    %15 = sbr.rel (0) target = $region5
  $region4: #{global_local_network.1} parent=0 // pred_region
    _
  $region5: #{global_local_network.1} parent=0 // pred_fallthru
    _
  // Predicated region
  $region6: #{global_local_network.1} parent=0 // pred_check
    _
  $region7: #{global_local_network.1} parent=0 // pred_check_branch
    %17 = sbr.rel (0) target = $region9
  $region8: #{global_local_network.1} parent=0 // pred_region
    _
  $region9: #{global_local_network.1} parent=0 // pred_fallthru
    _
  // Predicated region
  $region10: #{global_local_network.1} parent=0 // pred_check
    _
  $region11: #{global_local_network.1} parent=0 // pred_check_branch
    %19 = sbr.rel (0) target = $region13
  $region12: #{global_local_network.1} parent=0 // pred_region
    _
  $region13: #{global_local_network.1} parent=0 // pred_fallthru
    _
  // Predicated region
  $region14: #{global_local_network.1} parent=0 // pred_check
    _
  $region15: #{global_local_network.1} parent=0 // pred_check_branch
    %21 = sbr.rel (0) target = $region17
  $region16: #{global_local_network.1} parent=0 // pred_region
    _
  $region17: #{global_local_network.1} parent=0 // pred_fallthru
    _
  // Predicated region
  $region18: #{global_local_network.1} parent=0 // pred_check
    _
  $region19: #{global_local_network.1} parent=0 // pred_check_branch
    %23 = sbr.rel (0) target = $region21
  $region20: #{global_local_network.1} parent=0 // pred_region
    _
  $region21: #{global_local_network.1} parent=0 // pred_fallthru
    _
  // Predicated region
  $region22: #{global_local_network.1} parent=0 // pred_check
    _
  $region23: #{global_local_network.1} parent=0 // pred_check_branch
    %25 = sbr.rel (0) target = $region25
  $region24: #{global_local_network.1} parent=0 // pred_region
    _
  $region25: #{global_local_network.1} parent=0 // pred_fallthru
    _
  // Predicated region
  $region26: #{global_local_network.1} parent=0 // pred_check
    _
  $region27: #{global_local_network.1} parent=0 // pred_check_branch
    %27 = sbr.rel (0) target = $region29
  $region28: #{global_local_network.1} parent=0 // pred_region
    _
  $region29: #{global_local_network.1} parent=0 // pred_fallthru
    _
  // Predicated region
  $region30: #{global_local_network.1} parent=0 // pred_check
    _
  $region31: #{global_local_network.1} parent=0 // pred_check_branch
    %29 = sbr.rel (0) target = $region33
  $region32: #{global_local_network.1} parent=0 // pred_region
    _
  $region33: #{global_local_network.1} parent=0 // pred_fallthru
    _
  // Predicated region
  $region34: #{global_local_network.1} parent=0 // pred_check
    _
  $region35: #{global_local_network.1} parent=0 // pred_check_branch
    %31 = sbr.rel (0) target = $region37
  $region36: #{global_local_network.1} parent=0 // pred_region
    _
  $region37: #{global_local_network.1} parent=0 // pred_fallthru
    _
  %v33 = vld [vmem:[%s8] sm:$0xf]
  %v34 = vld [vmem:[%s8 + $0x4] sm:$0xf]
  %v35 = vld [vmem:[%s8 + $0x8] sm:$0x3]
  %v36 = vld [vmem:[%s8 + $0xa] sm:$0x1]
  %v37 = vld [vmem:[%s1] sm:$0xf]
  %v38 = vld [vmem:[%s1 + $0x4] sm:$0xf]
  %v39 = vld [vmem:[%s1 + $0x8] sm:$0xf]
  %v40 = vld [vmem:[%s1 + $0xc] sm:$0xf]
  %v41 = vld [vmem:[%s1 + $0x10] sm:$0xf]
  %v42 = vld [vmem:[%s1 + $0x14] sm:$0xf]
  %v43 = vld [vmem:[%s1 + $0x18] sm:$0xf]
  %v44 = vld [vmem:[%s1 + $0x1c] sm:$0xf]
  %v45 = vld [vmem:[%s1 + $0x20] sm:$0xf]
  %v46 = vld [vmem:[%s1 + $0x24] sm:$0xf]
  %v47 = vld [vmem:[%s1 + $0x28] sm:$0xf]
  %v48 = vld [vmem:[%s1 + $0x2c] sm:$0xf]
  %v49 = vld [vmem:[%s1 + $0x30] sm:$0xf]
  %v50 = vld [vmem:[%s1 + $0x34] sm:$0xf]
  %v51 = vld [vmem:[%s1 + $0x38] sm:$0xf]
  %v52 = vld [vmem:[%s1 + $0x3c] sm:$0xf]
  %v53 = vld [vmem:[%s3] sm:$0xff]
  %v54 = vld [vmem:[%s3 + $0x8] sm:$0xff]
  %v55 = vld [vmem:[%s3 + $0x10] sm:$0xff]
  %v56 = vld [vmem:[%s3 + $0x18] sm:$0xff]
  %v57 = vld [vmem:[%s3 + $0x20] sm:$0xff]
  %v58 = vld [vmem:[%s3 + $0x28] sm:$0xff]
  %v59 = vld [vmem:[%s3 + $0x30] sm:$0xff]
  %v60 = vld [vmem:[%s3 + $0x38] sm:$0xff]
  %v61 = vld [vmem:[%s3 + $0x40] sm:$0xff]
  %v62 = vld [vmem:[%s3 + $0x48] sm:$0xff]
  %v63 = vld [vmem:[%s3 + $0x50] sm:$0xff]
  %v64 = vld [vmem:[%s3 + $0x58] sm:$0xff]
  %v65 = vld [vmem:[%s3 + $0x60] sm:$0xff]
  %v66 = vld [vmem:[%s3 + $0x68] sm:$0xff]
  %v67 = vld [vmem:[%s3 + $0x70] sm:$0xff]
  %v68 = vld [vmem:[%s3 + $0x78] sm:$0xff]
  %v69 = vld [vmem:[%s3 + $0x80] sm:$0xff]
  %v70 = vld [vmem:[%s3 + $0x88] sm:$0xff]
  %v71 = vld [vmem:[%s3 + $0x90] sm:$0xff]
  %v72 = vld [vmem:[%s3 + $0x98] sm:$0xff]
  %v73 = vld [vmem:[%s3 + $0xa0] sm:$0xff]
  %v74 = vld [vmem:[%s3 + $0xa8] sm:$0xff]
  %v75 = vld [vmem:[%s3 + $0xb0] sm:$0xff]
  %v76 = vld [vmem:[%s3 + $0xb8] sm:$0xff]
  %v77 = vld [vmem:[%s3 + $0xc0] sm:$0xff]
  %v78 = vld [vmem:[%s3 + $0xc8] sm:$0xff]
  %v79 = vld [vmem:[%s3 + $0xd0] sm:$0xff]
  %v80 = vld [vmem:[%s3 + $0xd8] sm:$0xff]
  %v81 = vld [vmem:[%s3 + $0xe0] sm:$0xff]
  %v82 = vld [vmem:[%s3 + $0xe8] sm:$0xff]
  %v83 = vld [vmem:[%s3 + $0xf0] sm:$0xff]
  %v84 = vld [vmem:[%s3 + $0xf8] sm:$0xff]
  %v86 = vlaneseq
  %v87 = vshrl.u32 %v86, 7
  %v88 = vsub.s32 0, %v87
  %v89 = vrot.slane %v33, %v88
  %v90 = vlaneseq
  %v91 = vshrl.u32 %v90, 7
  %v92 = vsub.s32 1, %v91
  %v93 = vrot.slane %v33, %v92
  %v94 = vlaneseq
  %v95 = vshrl.u32 %v94, 7
  %v96 = vsub.s32 2, %v95
  %v97 = vrot.slane %v33, %v96
  %v98 = vlaneseq
  %v99 = vshrl.u32 %v98, 7
  %v100 = vsub.s32 3, %v99
  %v101 = vrot.slane %v33, %v100
  %v122 = vunpack.c.l.b16 %v37
  %v123 = vunpack.c.l.b16 %v38
  %v124 = vunpack.c.l.b16 %v39
  %v125 = vunpack.c.l.b16 %v40
  %v126 = vunpack.c.l.b16 %v41
  %v127 = vunpack.c.l.b16 %v42
  %v128 = vunpack.c.l.b16 %v43
  %v129 = vunpack.c.l.b16 %v44
  %v130 = vunpack.c.l.b16 %v45
  %v131 = vunpack.c.l.b16 %v46
  %v132 = vunpack.c.l.b16 %v47
  %v133 = vunpack.c.l.b16 %v48
  %v134 = vunpack.c.l.b16 %v49
  %v135 = vunpack.c.l.b16 %v50
  %v136 = vunpack.c.l.b16 %v51
  %v137 = vunpack.c.l.b16 %v52
  %v138 = vpack.c.b16 %v123, %v122
  %v139 = vpack.c.b16 %v125, %v124
  %v140 = vpack.c.b16 %v127, %v126
  %v141 = vpack.c.b16 %v129, %v128
  %v142 = vpack.c.b16 %v131, %v130
  %v143 = vpack.c.b16 %v133, %v132
  %v144 = vpack.c.b16 %v135, %v134
  %v145 = vpack.c.b16 %v137, %v136
  %v186 = vunpack.c.l.b16 %v53
  %v187 = vunpack.c.h.b16 %v53
  %v188 = vunpack.c.l.b16 %v54
  %v189 = vunpack.c.h.b16 %v54
  %v190 = vunpack.c.l.b16 %v55
  %v191 = vunpack.c.h.b16 %v55
  %v192 = vunpack.c.l.b16 %v56
  %v193 = vunpack.c.h.b16 %v56
  %v194 = vunpack.c.l.b16 %v57
  %v195 = vunpack.c.h.b16 %v57
  %v196 = vunpack.c.l.b16 %v58
  %v197 = vunpack.c.h.b16 %v58
  %v198 = vunpack.c.l.b16 %v59
  %v199 = vunpack.c.h.b16 %v59
  %v200 = vunpack.c.l.b16 %v60
  %v201 = vunpack.c.h.b16 %v60
  %v202 = vunpack.c.l.b16 %v61
  %v203 = vunpack.c.h.b16 %v61
  %v204 = vunpack.c.l.b16 %v62
  %v205 = vunpack.c.h.b16 %v62
  %v206 = vunpack.c.l.b16 %v63
  %v207 = vunpack.c.h.b16 %v63
  %v208 = vunpack.c.l.b16 %v64
  %v209 = vunpack.c.h.b16 %v64
  %v210 = vunpack.c.l.b16 %v65
  %v211 = vunpack.c.h.b16 %v65
  %v212 = vunpack.c.l.b16 %v66
  %v213 = vunpack.c.h.b16 %v66
  %v214 = vunpack.c.l.b16 %v67
  %v215 = vunpack.c.h.b16 %v67
  %v216 = vunpack.c.l.b16 %v68
  %v217 = vunpack.c.h.b16 %v68
  %v218 = vunpack.c.l.b16 %v69
  %v219 = vunpack.c.h.b16 %v69
  %v220 = vunpack.c.l.b16 %v70
  %v221 = vunpack.c.h.b16 %v70
  %v222 = vunpack.c.l.b16 %v71
  %v223 = vunpack.c.h.b16 %v71
  %v224 = vunpack.c.l.b16 %v72
  %v225 = vunpack.c.h.b16 %v72
  %v226 = vunpack.c.l.b16 %v73
  %v227 = vunpack.c.h.b16 %v73
  %v228 = vunpack.c.l.b16 %v74
  %v229 = vunpack.c.h.b16 %v74
  %v230 = vunpack.c.l.b16 %v75
  %v231 = vunpack.c.h.b16 %v75
  %v232 = vunpack.c.l.b16 %v76
  %v233 = vunpack.c.h.b16 %v76
  %v234 = vunpack.c.l.b16 %v77
  %v235 = vunpack.c.h.b16 %v77
  %v236 = vunpack.c.l.b16 %v78
  %v237 = vunpack.c.h.b16 %v78
  %v238 = vunpack.c.l.b16 %v79
  %v239 = vunpack.c.h.b16 %v79
  %v240 = vunpack.c.l.b16 %v80
  %v241 = vunpack.c.h.b16 %v80
  %v242 = vunpack.c.l.b16 %v81
  %v243 = vunpack.c.h.b16 %v81
  %v244 = vunpack.c.l.b16 %v82
  %v245 = vunpack.c.h.b16 %v82
  %v246 = vunpack.c.l.b16 %v83
  %v247 = vunpack.c.h.b16 %v83
  %v248 = vunpack.c.l.b16 %v84
  %v249 = vunpack.c.h.b16 %v84
  %v250 = vpack.c.b16 %v190, %v186
  %v251 = vpack.c.b16 %v191, %v187
  %v252 = vpack.c.b16 %v192, %v188
  %v253 = vpack.c.b16 %v193, %v189
  %v254 = vpack.c.b16 %v198, %v194
  %v255 = vpack.c.b16 %v199, %v195
  %v256 = vpack.c.b16 %v200, %v196
  %v257 = vpack.c.b16 %v201, %v197
  %v258 = vpack.c.b16 %v206, %v202
  %v259 = vpack.c.b16 %v207, %v203
  %v260 = vpack.c.b16 %v208, %v204
  %v261 = vpack.c.b16 %v209, %v205
  %v262 = vpack.c.b16 %v214, %v210
  %v263 = vpack.c.b16 %v215, %v211
  %v264 = vpack.c.b16 %v216, %v212
  %v265 = vpack.c.b16 %v217, %v213
  %v266 = vpack.c.b16 %v222, %v218
  %v267 = vpack.c.b16 %v223, %v219
  %v268 = vpack.c.b16 %v224, %v220
  %v269 = vpack.c.b16 %v225, %v221
  %v270 = vpack.c.b16 %v230, %v226
  %v271 = vpack.c.b16 %v231, %v227
  %v272 = vpack.c.b16 %v232, %v228
  %v273 = vpack.c.b16 %v233, %v229
  %v274 = vpack.c.b16 %v238, %v234
  %v275 = vpack.c.b16 %v239, %v235
  %v276 = vpack.c.b16 %v240, %v236
  %v277 = vpack.c.b16 %v241, %v237
  %v278 = vpack.c.b16 %v246, %v242
  %v279 = vpack.c.b16 %v247, %v243
  %v280 = vpack.c.b16 %v248, %v244
  %v281 = vpack.c.b16 %v249, %v245
  %314 = vmatprep.subr.bf16.mxu0 %v251
  %315 = vmatpush1.bf16.msra.mxu0 %v250
  %316 = vmatprep.subr.bf16.mxu0 %v255
  %317 = vmatpush1.bf16.msra.mxu0 %v254
  %318 = vmatprep.subr.bf16.mxu0 %v259
  %319 = vmatpush1.bf16.msra.mxu0 %v258
  %320 = vmatprep.subr.bf16.mxu0 %v263
  %321 = vmatpush1.bf16.msra.mxu0 %v262
  %322 = vmatprep.subr.bf16.mxu0 %v267
  %323 = vmatpush1.bf16.msra.mxu0 %v266
  %324 = vmatprep.subr.bf16.mxu0 %v271
  %325 = vmatpush1.bf16.msra.mxu0 %v270
  %326 = vmatprep.subr.bf16.mxu0 %v275
  %327 = vmatpush1.bf16.msra.mxu0 %v274
  %328 = vmatprep.subr.bf16.mxu0 %v279
  %329 = vmatpush1.bf16.msra.mxu0 %v278
  %330 = vmatprep.subr.bf16.mxu0 0
  %331 = vmatpush1.bf16.msra.mxu0 0
  %332 = vmatprep.subr.bf16.mxu0 0
  %333 = vmatpush1.bf16.msra.mxu0 0
  %334 = vmatprep.subr.bf16.mxu0 0
  %335 = vmatpush1.bf16.msra.mxu0 0
  %336 = vmatprep.subr.bf16.mxu0 0
  %337 = vmatpush1.bf16.msra.mxu0 0
  %338 = vmatprep.subr.bf16.mxu0 0
  %339 = vmatpush1.bf16.msra.mxu0 0
  %340 = vmatprep.subr.bf16.mxu0 0
  %341 = vmatpush1.bf16.msra.mxu0 0
  %342 = vmatprep.subr.bf16.mxu0 0
  %343 = vmatpush1.bf16.msra.mxu0 0
  %344 = vmatprep.subr.bf16.mxu0 0
  %345 = vmatpush1.bf16.msra.mxu0 0
  %346 = vmatprep.mubr.bf16.mxu0 0
  %347 = vmatmul.mubr.bf16.gmra.mrb[0].mxu0 %v138
  %v348 = vpop.f32.mrb[0].mxu0
  %v349 = vadd.f32 %v89, %v348
  %v350 = vpop.f32.mrb[0].mxu0
  %v351 = vadd.f32 %v93, %v350
  %v352 = vpop.f32.mrb[0].mxu0
  %v353 = vadd.f32 %v89, %v352
  %v354 = vpop.f32.mrb[0].mxu0
  %v355 = vadd.f32 %v93, %v354
  %356 = vmatprep.mubr.bf16.mxu0 0
  %357 = vmatmul.mubr.bf16.gmra.mrb[0].mxu0 %v139
  %v358 = vpop.f32.mrb[0].mxu0
  %v359 = vadd.f32 %v89, %v358
  %v360 = vpop.f32.mrb[0].mxu0
  %v361 = vadd.f32 %v93, %v360
  %v362 = vpop.f32.mrb[0].mxu0
  %v363 = vadd.f32 %v89, %v362
  %v364 = vpop.f32.mrb[0].mxu0
  %v365 = vadd.f32 %v93, %v364
  %366 = vmatprep.mubr.bf16.mxu0 0
  %367 = vmatmul.mubr.bf16.gmra.mrb[0].mxu0 %v140
  %v368 = vpop.f32.mrb[0].mxu0
  %v369 = vadd.f32 %v89, %v368
  %v370 = vpop.f32.mrb[0].mxu0
  %v371 = vadd.f32 %v93, %v370
  %v372 = vpop.f32.mrb[0].mxu0
  %v373 = vadd.f32 %v89, %v372
  %v374 = vpop.f32.mrb[0].mxu0
  %v375 = vadd.f32 %v93, %v374
  %376 = vmatprep.mubr.bf16.mxu0 0
  %377 = vmatmul.mubr.bf16.gmra.mrb[0].mxu0 %v141
  %v378 = vpop.f32.mrb[0].mxu0
  %v379 = vadd.f32 %v89, %v378
  %v380 = vpop.f32.mrb[0].mxu0
  %v381 = vadd.f32 %v93, %v380
  %v382 = vpop.f32.mrb[0].mxu0
  %v383 = vadd.f32 %v89, %v382
  %v384 = vpop.f32.mrb[0].mxu0
  %v385 = vadd.f32 %v93, %v384
  %386 = vmatprep.mubr.bf16.mxu0 0
  %387 = vmatmul.mubr.bf16.gmra.mrb[0].mxu0 %v142
  %v388 = vpop.f32.mrb[0].mxu0
  %v389 = vadd.f32 %v89, %v388
  %v390 = vpop.f32.mrb[0].mxu0
  %v391 = vadd.f32 %v93, %v390
  %v392 = vpop.f32.mrb[0].mxu0
  %v393 = vadd.f32 %v89, %v392
  %v394 = vpop.f32.mrb[0].mxu0
  %v395 = vadd.f32 %v93, %v394
  %396 = vmatprep.mubr.bf16.mxu0 0
  %397 = vmatmul.mubr.bf16.gmra.mrb[0].mxu0 %v143
  %v398 = vpop.f32.mrb[0].mxu0
  %v399 = vadd.f32 %v89, %v398
  %v400 = vpop.f32.mrb[0].mxu0
  %v401 = vadd.f32 %v93, %v400
  %v402 = vpop.f32.mrb[0].mxu0
  %v403 = vadd.f32 %v89, %v402
  %v404 = vpop.f32.mrb[0].mxu0
  %v405 = vadd.f32 %v93, %v404
  %406 = vmatprep.mubr.bf16.mxu0 0
  %407 = vmatmul.mubr.bf16.gmra.mrb[0].mxu0 %v144
  %v408 = vpop.f32.mrb[0].mxu0
  %v409 = vadd.f32 %v89, %v408
  %v410 = vpop.f32.mrb[0].mxu0
  %v411 = vadd.f32 %v93, %v410
  %v412 = vpop.f32.mrb[0].mxu0
  %v413 = vadd.f32 %v89, %v412
  %v414 = vpop.f32.mrb[0].mxu0
  %v415 = vadd.f32 %v93, %v414
  %416 = vmatprep.mubr.bf16.mxu0 0
  %417 = vmatmul.mubr.bf16.gmra.mrb[0].mxu0 %v145
  %v418 = vpop.f32.mrb[0].mxu0
  %v419 = vadd.f32 %v89, %v418
  %v420 = vpop.f32.mrb[0].mxu0
  %v421 = vadd.f32 %v93, %v420
  %v422 = vpop.f32.mrb[0].mxu0
  %v423 = vadd.f32 %v89, %v422
  %v424 = vpop.f32.mrb[0].mxu0
  %v425 = vadd.f32 %v93, %v424
  %426 = vdwg.mxu0
  %427 = vmatprep.subr.bf16.mxu0 %v253
  %428 = vmatpush1.bf16.msra.mxu0 %v252
  %429 = vmatprep.subr.bf16.mxu0 %v257
  %430 = vmatpush1.bf16.msra.mxu0 %v256
  %431 = vmatprep.subr.bf16.mxu0 %v261
  %432 = vmatpush1.bf16.msra.mxu0 %v260
  %433 = vmatprep.subr.bf16.mxu0 %v265
  %434 = vmatpush1.bf16.msra.mxu0 %v264
  %435 = vmatprep.subr.bf16.mxu0 %v269
  %436 = vmatpush1.bf16.msra.mxu0 %v268
  %437 = vmatprep.subr.bf16.mxu0 %v273
  %438 = vmatpush1.bf16.msra.mxu0 %v272
  %439 = vmatprep.subr.bf16.mxu0 %v277
  %440 = vmatpush1.bf16.msra.mxu0 %v276
  %441 = vmatprep.subr.bf16.mxu0 %v281
  %442 = vmatpush1.bf16.msra.mxu0 %v280
  %443 = vmatprep.subr.bf16.mxu0 0
  %444 = vmatpush1.bf16.msra.mxu0 0
  %445 = vmatprep.subr.bf16.mxu0 0
  %446 = vmatpush1.bf16.msra.mxu0 0
  %447 = vmatprep.subr.bf16.mxu0 0
  %448 = vmatpush1.bf16.msra.mxu0 0
  %449 = vmatprep.subr.bf16.mxu0 0
  %450 = vmatpush1.bf16.msra.mxu0 0
  %451 = vmatprep.subr.bf16.mxu0 0
  %452 = vmatpush1.bf16.msra.mxu0 0
  %453 = vmatprep.subr.bf16.mxu0 0
  %454 = vmatpush1.bf16.msra.mxu0 0
  %455 = vmatprep.subr.bf16.mxu0 0
  %456 = vmatpush1.bf16.msra.mxu0 0
  %457 = vmatprep.subr.bf16.mxu0 0
  %458 = vmatpush1.bf16.msra.mxu0 0
  %459 = vmatprep.mubr.bf16.mxu0 0
  %460 = vmatmul.mubr.bf16.gmra.mrb[0].mxu0 %v138
  %v461 = vpop.f32.mrb[0].mxu0
  %v462 = vadd.f32 %v97, %v461
  %v463 = vpop.f32.mrb[0].mxu0
  %v464 = vadd.f32 %v101, %v463
  %v465 = vpop.f32.mrb[0].mxu0
  %v466 = vadd.f32 %v97, %v465
  %v467 = vpop.f32.mrb[0].mxu0
  %v468 = vadd.f32 %v101, %v467
  %469 = vmatprep.mubr.bf16.mxu0 0
  %470 = vmatmul.mubr.bf16.gmra.mrb[0].mxu0 %v139
  %v471 = vpop.f32.mrb[0].mxu0
  %v472 = vadd.f32 %v97, %v471
  %v473 = vpop.f32.mrb[0].mxu0
  %v474 = vadd.f32 %v101, %v473
  %v475 = vpop.f32.mrb[0].mxu0
  %v476 = vadd.f32 %v97, %v475
  %v477 = vpop.f32.mrb[0].mxu0
  %v478 = vadd.f32 %v101, %v477
  %479 = vmatprep.mubr.bf16.mxu0 0
  %480 = vmatmul.mubr.bf16.gmra.mrb[0].mxu0 %v140
  %v481 = vpop.f32.mrb[0].mxu0
  %v482 = vadd.f32 %v97, %v481
  %v483 = vpop.f32.mrb[0].mxu0
  %v484 = vadd.f32 %v101, %v483
  %v485 = vpop.f32.mrb[0].mxu0
  %v486 = vadd.f32 %v97, %v485
  %v487 = vpop.f32.mrb[0].mxu0
  %v488 = vadd.f32 %v101, %v487
  %489 = vmatprep.mubr.bf16.mxu0 0
  %490 = vmatmul.mubr.bf16.gmra.mrb[0].mxu0 %v141
  %v491 = vpop.f32.mrb[0].mxu0
  %v492 = vadd.f32 %v97, %v491
  %v493 = vpop.f32.mrb[0].mxu0
  %v494 = vadd.f32 %v101, %v493
  %v495 = vpop.f32.mrb[0].mxu0
  %v496 = vadd.f32 %v97, %v495
  %v497 = vpop.f32.mrb[0].mxu0
  %v498 = vadd.f32 %v101, %v497
  %499 = vmatprep.mubr.bf16.mxu0 0
  %500 = vmatmul.mubr.bf16.gmra.mrb[0].mxu0 %v142
  %v501 = vpop.f32.mrb[0].mxu0
  %v502 = vadd.f32 %v97, %v501
  %v503 = vpop.f32.mrb[0].mxu0
  %v504 = vadd.f32 %v101, %v503
  %v505 = vpop.f32.mrb[0].mxu0
  %v506 = vadd.f32 %v97, %v505
  %v507 = vpop.f32.mrb[0].mxu0
  %v508 = vadd.f32 %v101, %v507
  %509 = vmatprep.mubr.bf16.mxu0 0
  %510 = vmatmul.mubr.bf16.gmra.mrb[0].mxu0 %v143
  %v511 = vpop.f32.mrb[0].mxu0
  %v512 = vadd.f32 %v97, %v511
  %v513 = vpop.f32.mrb[0].mxu0
  %v514 = vadd.f32 %v101, %v513
  %v515 = vpop.f32.mrb[0].mxu0
  %v516 = vadd.f32 %v97, %v515
  %v517 = vpop.f32.mrb[0].mxu0
  %v518 = vadd.f32 %v101, %v517
  %519 = vmatprep.mubr.bf16.mxu0 0
  %520 = vmatmul.mubr.bf16.gmra.mrb[0].mxu0 %v144
  %v521 = vpop.f32.mrb[0].mxu0
  %v522 = vadd.f32 %v97, %v521
  %v523 = vpop.f32.mrb[0].mxu0
  %v524 = vadd.f32 %v101, %v523
  %v525 = vpop.f32.mrb[0].mxu0
  %v526 = vadd.f32 %v97, %v525
  %v527 = vpop.f32.mrb[0].mxu0
  %v528 = vadd.f32 %v101, %v527
  %529 = vmatprep.mubr.bf16.mxu0 0
  %530 = vmatmul.mubr.bf16.gmra.mrb[0].mxu0 %v145
  %v531 = vpop.f32.mrb[0].mxu0
  %v532 = vadd.f32 %v97, %v531
  %v533 = vpop.f32.mrb[0].mxu0
  %v534 = vadd.f32 %v101, %v533
  %v535 = vpop.f32.mrb[0].mxu0
  %v536 = vadd.f32 %v97, %v535
  %v537 = vpop.f32.mrb[0].mxu0
  %v538 = vadd.f32 %v101, %v537
  %539 = vdwg.mxu0
  %v540 = vmax.f32 %v349, 0.0
  %v541 = vmax.f32 %v351, 0.0
  %v542 = vmax.f32 %v462, 0.0
  %v543 = vmax.f32 %v464, 0.0
  %v544 = vmax.f32 %v353, 0.0
  %v545 = vmax.f32 %v355, 0.0
  %v546 = vmax.f32 %v466, 0.0
  %v547 = vmax.f32 %v468, 0.0
  %v548 = vmax.f32 %v359, 0.0
  %v549 = vmax.f32 %v361, 0.0
  %v550 = vmax.f32 %v472, 0.0
  %v551 = vmax.f32 %v474, 0.0
  %v552 = vmax.f32 %v363, 0.0
  %v553 = vmax.f32 %v365, 0.0
  %v554 = vmax.f32 %v476, 0.0
  %v555 = vmax.f32 %v478, 0.0
  %v556 = vmax.f32 %v369, 0.0
  %v557 = vmax.f32 %v371, 0.0
  %v558 = vmax.f32 %v482, 0.0
  %v559 = vmax.f32 %v484, 0.0
  %v560 = vmax.f32 %v373, 0.0
  %v561 = vmax.f32 %v375, 0.0
  %v562 = vmax.f32 %v486, 0.0
  %v563 = vmax.f32 %v488, 0.0
  %v564 = vmax.f32 %v379, 0.0
  %v565 = vmax.f32 %v381, 0.0
  %v566 = vmax.f32 %v492, 0.0
  %v567 = vmax.f32 %v494, 0.0
  %v568 = vmax.f32 %v383, 0.0
  %v569 = vmax.f32 %v385, 0.0
  %v570 = vmax.f32 %v496, 0.0
  %v571 = vmax.f32 %v498, 0.0
  %v572 = vmax.f32 %v389, 0.0
  %v573 = vmax.f32 %v391, 0.0
  %v574 = vmax.f32 %v502, 0.0
  %v575 = vmax.f32 %v504, 0.0
  %v576 = vmax.f32 %v393, 0.0
  %v577 = vmax.f32 %v395, 0.0
  %v578 = vmax.f32 %v506, 0.0
  %v579 = vmax.f32 %v508, 0.0
  %v580 = vmax.f32 %v399, 0.0
  %v581 = vmax.f32 %v401, 0.0
  %v582 = vmax.f32 %v512, 0.0
  %v583 = vmax.f32 %v514, 0.0
  %v584 = vmax.f32 %v403, 0.0
  %v585 = vmax.f32 %v405, 0.0
  %v586 = vmax.f32 %v516, 0.0
  %v587 = vmax.f32 %v518, 0.0
  %v588 = vmax.f32 %v409, 0.0
  %v589 = vmax.f32 %v411, 0.0
  %v590 = vmax.f32 %v522, 0.0
  %v591 = vmax.f32 %v524, 0.0
  %v592 = vmax.f32 %v413, 0.0
  %v593 = vmax.f32 %v415, 0.0
  %v594 = vmax.f32 %v526, 0.0
  %v595 = vmax.f32 %v528, 0.0
  %v596 = vmax.f32 %v419, 0.0
  %v597 = vmax.f32 %v421, 0.0
  %v598 = vmax.f32 %v532, 0.0
  %v599 = vmax.f32 %v534, 0.0
  %v600 = vmax.f32 %v423, 0.0
  %v601 = vmax.f32 %v425, 0.0
  %v602 = vmax.f32 %v536, 0.0
  %v603 = vmax.f32 %v538, 0.0
  %v604 = vld [vmem:[%s2] sm:$0xf]
  %v605 = vpack.c.bf16 %v544, %v540
  %v606 = vpack.c.bf16 %v545, %v541
  %v607 = vpack.c.bf16 %v546, %v542
  %v608 = vpack.c.bf16 %v547, %v543
  %v609 = vpack.c.bf16 %v552, %v548
  %v610 = vpack.c.bf16 %v553, %v549
  %v611 = vpack.c.bf16 %v554, %v550
  %v612 = vpack.c.bf16 %v555, %v551
  %v613 = vpack.c.bf16 %v560, %v556
  %v614 = vpack.c.bf16 %v561, %v557
  %v615 = vpack.c.bf16 %v562, %v558
  %v616 = vpack.c.bf16 %v563, %v559
  %v617 = vpack.c.bf16 %v568, %v564
  %v618 = vpack.c.bf16 %v569, %v565
  %v619 = vpack.c.bf16 %v570, %v566
  %v620 = vpack.c.bf16 %v571, %v567
  %v621 = vpack.c.bf16 %v576, %v572
  %v622 = vpack.c.bf16 %v577, %v573
  %v623 = vpack.c.bf16 %v578, %v574
  %v624 = vpack.c.bf16 %v579, %v575
  %v625 = vpack.c.bf16 %v584, %v580
  %v626 = vpack.c.bf16 %v585, %v581
  %v627 = vpack.c.bf16 %v586, %v582
  %v628 = vpack.c.bf16 %v587, %v583
  %v629 = vpack.c.bf16 %v592, %v588
  %v630 = vpack.c.bf16 %v593, %v589
  %v631 = vpack.c.bf16 %v594, %v590
  %v632 = vpack.c.bf16 %v595, %v591
  %v633 = vpack.c.bf16 %v600, %v596
  %v634 = vpack.c.bf16 %v601, %v597
  %v635 = vpack.c.bf16 %v602, %v598
  %v636 = vpack.c.bf16 %v603, %v599
  %637 = vmatprep.subr.bf16.mxu0 %v606
  %638 = vmatpush1.bf16.msra.mxu0 %v605
  %639 = vmatprep.subr.bf16.mxu0 %v610
  %640 = vmatpush1.bf16.msra.mxu0 %v609
  %641 = vmatprep.subr.bf16.mxu0 %v614
  %642 = vmatpush1.bf16.msra.mxu0 %v613
  %643 = vmatprep.subr.bf16.mxu0 %v618
  %644 = vmatpush1.bf16.msra.mxu0 %v617
  %645 = vmatprep.subr.bf16.mxu0 %v622
  %646 = vmatpush1.bf16.msra.mxu0 %v621
  %647 = vmatprep.subr.bf16.mxu0 %v626
  %648 = vmatpush1.bf16.msra.mxu0 %v625
  %649 = vmatprep.subr.bf16.mxu0 %v630
  %650 = vmatpush1.bf16.msra.mxu0 %v629
  %651 = vmatprep.subr.bf16.mxu0 %v634
  %652 = vmatpush1.bf16.msra.mxu0 %v633
  %653 = vmatprep.subr.bf16.mxu0 0
  %654 = vmatpush1.bf16.msra.mxu0 0
  %655 = vmatprep.subr.bf16.mxu0 0
  %656 = vmatpush1.bf16.msra.mxu0 0
  %657 = vmatprep.subr.bf16.mxu0 0
  %658 = vmatpush1.bf16.msra.mxu0 0
  %659 = vmatprep.subr.bf16.mxu0 0
  %660 = vmatpush1.bf16.msra.mxu0 0
  %661 = vmatprep.subr.bf16.mxu0 0
  %662 = vmatpush1.bf16.msra.mxu0 0
  %663 = vmatprep.subr.bf16.mxu0 0
  %664 = vmatpush1.bf16.msra.mxu0 0
  %665 = vmatprep.subr.bf16.mxu0 0
  %666 = vmatpush1.bf16.msra.mxu0 0
  %667 = vmatprep.subr.bf16.mxu0 0
  %668 = vmatpush1.bf16.msra.mxu0 0
  %669 = vmatprep.mubr.bf16.mxu0 0
  %670 = vmatmul.mubr.bf16.gmra.mrb[0].mxu0 %v604
  %v671 = vpop.f32.mrb[0].mxu0
  %v672 = vadd.f32 0.0, %v671
  %v673 = vpop.f32.mrb[0].mxu0
  %v674 = vadd.f32 0.0, %v673
  %v675 = vpop.f32.mrb[0].mxu0
  %v676 = vpop.f32.mrb[0].mxu0
  %677 = vdwg.mxu0
  %678 = vmatprep.subr.bf16.mxu0 %v608
  %679 = vmatpush1.bf16.msra.mxu0 %v607
  %680 = vmatprep.subr.bf16.mxu0 %v612
  %681 = vmatpush1.bf16.msra.mxu0 %v611
  %682 = vmatprep.subr.bf16.mxu0 %v616
  %683 = vmatpush1.bf16.msra.mxu0 %v615
  %684 = vmatprep.subr.bf16.mxu0 %v620
  %685 = vmatpush1.bf16.msra.mxu0 %v619
  %686 = vmatprep.subr.bf16.mxu0 %v624
  %687 = vmatpush1.bf16.msra.mxu0 %v623
  %688 = vmatprep.subr.bf16.mxu0 %v628
  %689 = vmatpush1.bf16.msra.mxu0 %v627
  %690 = vmatprep.subr.bf16.mxu0 %v632
  %691 = vmatpush1.bf16.msra.mxu0 %v631
  %692 = vmatprep.subr.bf16.mxu0 %v636
  %693 = vmatpush1.bf16.msra.mxu0 %v635
  %694 = vmatprep.subr.bf16.mxu0 0
  %695 = vmatpush1.bf16.msra.mxu0 0
  %696 = vmatprep.subr.bf16.mxu0 0
  %697 = vmatpush1.bf16.msra.mxu0 0
  %698 = vmatprep.subr.bf16.mxu0 0
  %699 = vmatpush1.bf16.msra.mxu0 0
  %700 = vmatprep.subr.bf16.mxu0 0
  %701 = vmatpush1.bf16.msra.mxu0 0
  %702 = vmatprep.subr.bf16.mxu0 0
  %703 = vmatpush1.bf16.msra.mxu0 0
  %704 = vmatprep.subr.bf16.mxu0 0
  %705 = vmatpush1.bf16.msra.mxu0 0
  %706 = vmatprep.subr.bf16.mxu0 0
  %707 = vmatpush1.bf16.msra.mxu0 0
  %708 = vmatprep.subr.bf16.mxu0 0
  %709 = vmatpush1.bf16.msra.mxu0 0
  %710 = vmatprep.mubr.bf16.mxu0 0
  %711 = vmatmul.mubr.bf16.gmra.mrb[0].mxu0 %v604
  %v712 = vpop.f32.mrb[0].mxu0
  %v713 = vadd.f32 0.0, %v712
  %v714 = vpop.f32.mrb[0].mxu0
  %v715 = vadd.f32 0.0, %v714
  %v716 = vpop.f32.mrb[0].mxu0
  %v717 = vpop.f32.mrb[0].mxu0
  %718 = vdwg.mxu0
  %v719 = vld [vmem:[%s0] sm:$0xf]
  %v720 = vld [vmem:[%s4] sm:$0xff]
  %v721 = vld [vmem:[%s4 + $0x8] sm:$0xff]
  %v722 = vld [vmem:[%s4 + $0x10] sm:$0xff]
  %v723 = vld [vmem:[%s4 + $0x18] sm:$0xff]
  %v724 = vld [vmem:[%s4 + $0x20] sm:$0xff]
  %v725 = vld [vmem:[%s4 + $0x28] sm:$0xff]
  %v726 = vld [vmem:[%s4 + $0x30] sm:$0xff]
  %v727 = vld [vmem:[%s4 + $0x38] sm:$0xff]
  %v728 = vpack.c.bf16 %v672, %v672
  %v729 = vpack.c.bf16 %v674, %v674
  %v730 = vpack.c.bf16 %v713, %v713
  %v731 = vpack.c.bf16 %v715, %v715
  %v732 = vld [vmem:[%s5] sm:$0xff]
  %v733 = vld [vmem:[%s5 + $0x8] sm:$0xff]
  %v734 = vld [vmem:[%s5 + $0x10] sm:$0xff]
  %v735 = vld [vmem:[%s5 + $0x18] sm:$0xff]
  %v736 = vld [vmem:[%s5 + $0x20] sm:$0xff]
  %v737 = vld [vmem:[%s5 + $0x28] sm:$0xff]
  %v738 = vld [vmem:[%s5 + $0x30] sm:$0xff]
  %v739 = vld [vmem:[%s5 + $0x38] sm:$0xff]
  %v740 = vld [vmem:[%s5 + $0x40] sm:$0xff]
  %v741 = vld [vmem:[%s5 + $0x48] sm:$0xff]
  %v742 = vld [vmem:[%s5 + $0x50] sm:$0xff]
  %v743 = vld [vmem:[%s5 + $0x58] sm:$0xff]
  %v744 = vld [vmem:[%s5 + $0x60] sm:$0xff]
  %v745 = vld [vmem:[%s5 + $0x68] sm:$0xff]
  %v746 = vld [vmem:[%s5 + $0x70] sm:$0xff]
  %v747 = vld [vmem:[%s5 + $0x78] sm:$0xff]
  %v748 = vld [vmem:[%s5 + $0x80] sm:$0xff]
  %v749 = vld [vmem:[%s5 + $0x88] sm:$0xff]
  %v750 = vld [vmem:[%s5 + $0x90] sm:$0xff]
  %v751 = vld [vmem:[%s5 + $0x98] sm:$0xff]
  %v752 = vld [vmem:[%s5 + $0xa0] sm:$0xff]
  %v753 = vld [vmem:[%s5 + $0xa8] sm:$0xff]
  %v754 = vld [vmem:[%s5 + $0xb0] sm:$0xff]
  %v755 = vld [vmem:[%s5 + $0xb8] sm:$0xff]
  %v756 = vld [vmem:[%s5 + $0xc0] sm:$0xff]
  %v757 = vld [vmem:[%s5 + $0xc8] sm:$0xff]
  %v758 = vld [vmem:[%s5 + $0xd0] sm:$0xff]
  %v759 = vld [vmem:[%s5 + $0xd8] sm:$0xff]
  %v760 = vld [vmem:[%s5 + $0xe0] sm:$0xff]
  %v761 = vld [vmem:[%s5 + $0xe8] sm:$0xff]
  %v762 = vld [vmem:[%s5 + $0xf0] sm:$0xff]
  %v763 = vld [vmem:[%s5 + $0xf8] sm:$0xff]
  %v764 = vld [vmem:[%s5 + $0x100] sm:$0xff]
  %v765 = vld [vmem:[%s5 + $0x108] sm:$0xff]
  %v766 = vld [vmem:[%s5 + $0x110] sm:$0xff]
  %v767 = vld [vmem:[%s5 + $0x118] sm:$0xff]
  %v768 = vld [vmem:[%s5 + $0x120] sm:$0xff]
  %v769 = vld [vmem:[%s5 + $0x128] sm:$0xff]
  %v770 = vld [vmem:[%s5 + $0x130] sm:$0xff]
  %v771 = vld [vmem:[%s5 + $0x138] sm:$0xff]
  %v772 = vld [vmem:[%s5 + $0x140] sm:$0xff]
  %v773 = vld [vmem:[%s5 + $0x148] sm:$0xff]
  %v774 = vld [vmem:[%s5 + $0x150] sm:$0xff]
  %v775 = vld [vmem:[%s5 + $0x158] sm:$0xff]
  %v776 = vld [vmem:[%s5 + $0x160] sm:$0xff]
  %v777 = vld [vmem:[%s5 + $0x168] sm:$0xff]
  %v778 = vld [vmem:[%s5 + $0x170] sm:$0xff]
  %v779 = vld [vmem:[%s5 + $0x178] sm:$0xff]
  %v780 = vld [vmem:[%s5 + $0x180] sm:$0xff]
  %v781 = vld [vmem:[%s5 + $0x188] sm:$0xff]
  %v782 = vld [vmem:[%s5 + $0x190] sm:$0xff]
  %v783 = vld [vmem:[%s5 + $0x198] sm:$0xff]
  %v784 = vld [vmem:[%s5 + $0x1a0] sm:$0xff]
  %v785 = vld [vmem:[%s5 + $0x1a8] sm:$0xff]
  %v786 = vld [vmem:[%s5 + $0x1b0] sm:$0xff]
  %v787 = vld [vmem:[%s5 + $0x1b8] sm:$0xff]
  %v788 = vld [vmem:[%s5 + $0x1c0] sm:$0xff]
  %v789 = vld [vmem:[%s5 + $0x1c8] sm:$0xff]
  %v790 = vld [vmem:[%s5 + $0x1d0] sm:$0xff]
  %v791 = vld [vmem:[%s5 + $0x1d8] sm:$0xff]
  %v792 = vld [vmem:[%s5 + $0x1e0] sm:$0xff]
  %v793 = vld [vmem:[%s5 + $0x1e8] sm:$0xff]
  %v794 = vld [vmem:[%s5 + $0x1f0] sm:$0xff]
  %v795 = vld [vmem:[%s5 + $0x1f8] sm:$0xff]
  %v796 = vld [vmem:[%s5 + $0x200] sm:$0xff]
  %v797 = vld [vmem:[%s5 + $0x208] sm:$0xff]
  %v798 = vld [vmem:[%s5 + $0x210] sm:$0xff]
  %v799 = vld [vmem:[%s5 + $0x218] sm:$0xff]
  %v800 = vld [vmem:[%s5 + $0x220] sm:$0xff]
  %v801 = vld [vmem:[%s5 + $0x228] sm:$0xff]
  %v802 = vld [vmem:[%s5 + $0x230] sm:$0xff]
  %v803 = vld [vmem:[%s5 + $0x238] sm:$0xff]
  %v804 = vld [vmem:[%s5 + $0x240] sm:$0xff]
  %v805 = vld [vmem:[%s5 + $0x248] sm:$0xff]
  %v806 = vld [vmem:[%s5 + $0x250] sm:$0xff]
  %v807 = vld [vmem:[%s5 + $0x258] sm:$0xff]
  %v808 = vld [vmem:[%s5 + $0x260] sm:$0xff]
  %v809 = vld [vmem:[%s5 + $0x268] sm:$0xff]
  %v810 = vld [vmem:[%s5 + $0x270] sm:$0xff]
  %v811 = vld [vmem:[%s5 + $0x278] sm:$0xff]
  %v812 = vld [vmem:[%s5 + $0x280] sm:$0xff]
  %v813 = vld [vmem:[%s5 + $0x288] sm:$0xff]
  %v814 = vld [vmem:[%s5 + $0x290] sm:$0xff]
  %v815 = vld [vmem:[%s5 + $0x298] sm:$0xff]
  %v816 = vld [vmem:[%s5 + $0x2a0] sm:$0xff]
  %v817 = vld [vmem:[%s5 + $0x2a8] sm:$0xff]
  %v818 = vld [vmem:[%s5 + $0x2b0] sm:$0xff]
  %v819 = vld [vmem:[%s5 + $0x2b8] sm:$0xff]
  %v820 = vld [vmem:[%s5 + $0x2c0] sm:$0xff]
  %v821 = vld [vmem:[%s5 + $0x2c8] sm:$0xff]
  %v822 = vld [vmem:[%s5 + $0x2d0] sm:$0xff]
  %v823 = vld [vmem:[%s5 + $0x2d8] sm:$0xff]
  %v824 = vld [vmem:[%s5 + $0x2e0] sm:$0xff]
  %v825 = vld [vmem:[%s5 + $0x2e8] sm:$0xff]
  %v826 = vld [vmem:[%s5 + $0x2f0] sm:$0xff]
  %v827 = vld [vmem:[%s5 + $0x2f8] sm:$0xff]
  %v828 = vld [vmem:[%s5 + $0x300] sm:$0xff]
  %v829 = vld [vmem:[%s5 + $0x308] sm:$0xff]
  %v830 = vld [vmem:[%s5 + $0x310] sm:$0xff]
  %v831 = vld [vmem:[%s5 + $0x318] sm:$0xff]
  %v832 = vld [vmem:[%s5 + $0x320] sm:$0xff]
  %v833 = vld [vmem:[%s5 + $0x328] sm:$0xff]
  %v834 = vld [vmem:[%s5 + $0x330] sm:$0xff]
  %v835 = vld [vmem:[%s5 + $0x338] sm:$0xff]
  %v836 = vld [vmem:[%s5 + $0x340] sm:$0xff]
  %v837 = vld [vmem:[%s5 + $0x348] sm:$0xff]
  %v838 = vld [vmem:[%s5 + $0x350] sm:$0xff]
  %v839 = vld [vmem:[%s5 + $0x358] sm:$0xff]
  %v840 = vld [vmem:[%s5 + $0x360] sm:$0xff]
  %v841 = vld [vmem:[%s5 + $0x368] sm:$0xff]
  %v842 = vld [vmem:[%s5 + $0x370] sm:$0xff]
  %v843 = vld [vmem:[%s5 + $0x378] sm:$0xff]
  %v844 = vld [vmem:[%s5 + $0x380] sm:$0xff]
  %v845 = vld [vmem:[%s5 + $0x388] sm:$0xff]
  %v846 = vld [vmem:[%s5 + $0x390] sm:$0xff]
  %v847 = vld [vmem:[%s5 + $0x398] sm:$0xff]
  %v848 = vld [vmem:[%s5 + $0x3a0] sm:$0xff]
  %v849 = vld [vmem:[%s5 + $0x3a8] sm:$0xff]
  %v850 = vld [vmem:[%s5 + $0x3b0] sm:$0xff]
  %v851 = vld [vmem:[%s5 + $0x3b8] sm:$0xff]
  %v852 = vld [vmem:[%s5 + $0x3c0] sm:$0xff]
  %v853 = vld [vmem:[%s5 + $0x3c8] sm:$0xff]
  %v854 = vld [vmem:[%s5 + $0x3d0] sm:$0xff]
  %v855 = vld [vmem:[%s5 + $0x3d8] sm:$0xff]
  %v856 = vld [vmem:[%s5 + $0x3e0] sm:$0xff]
  %v857 = vld [vmem:[%s5 + $0x3e8] sm:$0xff]
  %v858 = vld [vmem:[%s5 + $0x3f0] sm:$0xff]
  %v859 = vld [vmem:[%s5 + $0x3f8] sm:$0xff]
  %v988 = vunpack.c.l.b16 %v732
  %v989 = vunpack.c.h.b16 %v732
  %v990 = vunpack.c.l.b16 %v733
  %v991 = vunpack.c.h.b16 %v733
  %v992 = vunpack.c.l.b16 %v734
  %v993 = vunpack.c.h.b16 %v734
  %v994 = vunpack.c.l.b16 %v735
  %v995 = vunpack.c.h.b16 %v735
  %v996 = vunpack.c.l.b16 %v736
  %v997 = vunpack.c.h.b16 %v736
  %v998 = vunpack.c.l.b16 %v737
  %v999 = vunpack.c.h.b16 %v737
  %v1000 = vunpack.c.l.b16 %v738
  %v1001 = vunpack.c.h.b16 %v738
  %v1002 = vunpack.c.l.b16 %v739
  %v1003 = vunpack.c.h.b16 %v739
  %v1004 = vunpack.c.l.b16 %v740
  %v1005 = vunpack.c.h.b16 %v740
  %v1006 = vunpack.c.l.b16 %v741
  %v1007 = vunpack.c.h.b16 %v741
  %v1008 = vunpack.c.l.b16 %v742
  %v1009 = vunpack.c.h.b16 %v742
  %v1010 = vunpack.c.l.b16 %v743
  %v1011 = vunpack.c.h.b16 %v743
  %v1012 = vunpack.c.l.b16 %v744
  %v1013 = vunpack.c.h.b16 %v744
  %v1014 = vunpack.c.l.b16 %v745
  %v1015 = vunpack.c.h.b16 %v745
  %v1016 = vunpack.c.l.b16 %v746
  %v1017 = vunpack.c.h.b16 %v746
  %v1018 = vunpack.c.l.b16 %v747
  %v1019 = vunpack.c.h.b16 %v747
  %v1020 = vunpack.c.l.b16 %v748
  %v1021 = vunpack.c.h.b16 %v748
  %v1022 = vunpack.c.l.b16 %v749
  %v1023 = vunpack.c.h.b16 %v749
  %v1024 = vunpack.c.l.b16 %v750
  %v1025 = vunpack.c.h.b16 %v750
  %v1026 = vunpack.c.l.b16 %v751
  %v1027 = vunpack.c.h.b16 %v751
  %v1028 = vunpack.c.l.b16 %v752
  %v1029 = vunpack.c.h.b16 %v752
  %v1030 = vunpack.c.l.b16 %v753
  %v1031 = vunpack.c.h.b16 %v753
  %v1032 = vunpack.c.l.b16 %v754
  %v1033 = vunpack.c.h.b16 %v754
  %v1034 = vunpack.c.l.b16 %v755
  %v1035 = vunpack.c.h.b16 %v755
  %v1036 = vunpack.c.l.b16 %v756
  %v1037 = vunpack.c.h.b16 %v756
  %v1038 = vunpack.c.l.b16 %v757
  %v1039 = vunpack.c.h.b16 %v757
  %v1040 = vunpack.c.l.b16 %v758
  %v1041 = vunpack.c.h.b16 %v758
  %v1042 = vunpack.c.l.b16 %v759
  %v1043 = vunpack.c.h.b16 %v759
  %v1044 = vunpack.c.l.b16 %v760
  %v1045 = vunpack.c.h.b16 %v760
  %v1046 = vunpack.c.l.b16 %v761
  %v1047 = vunpack.c.h.b16 %v761
  %v1048 = vunpack.c.l.b16 %v762
  %v1049 = vunpack.c.h.b16 %v762
  %v1050 = vunpack.c.l.b16 %v763
  %v1051 = vunpack.c.h.b16 %v763
  %v1052 = vunpack.c.l.b16 %v764
  %v1053 = vunpack.c.h.b16 %v764
  %v1054 = vunpack.c.l.b16 %v765
  %v1055 = vunpack.c.h.b16 %v765
  %v1056 = vunpack.c.l.b16 %v766
  %v1057 = vunpack.c.h.b16 %v766
  %v1058 = vunpack.c.l.b16 %v767
  %v1059 = vunpack.c.h.b16 %v767
  %v1060 = vunpack.c.l.b16 %v768
  %v1061 = vunpack.c.h.b16 %v768
  %v1062 = vunpack.c.l.b16 %v769
  %v1063 = vunpack.c.h.b16 %v769
  %v1064 = vunpack.c.l.b16 %v770
  %v1065 = vunpack.c.h.b16 %v770
  %v1066 = vunpack.c.l.b16 %v771
  %v1067 = vunpack.c.h.b16 %v771
  %v1068 = vunpack.c.l.b16 %v772
  %v1069 = vunpack.c.h.b16 %v772
  %v1070 = vunpack.c.l.b16 %v773
  %v1071 = vunpack.c.h.b16 %v773
  %v1072 = vunpack.c.l.b16 %v774
  %v1073 = vunpack.c.h.b16 %v774
  %v1074 = vunpack.c.l.b16 %v775
  %v1075 = vunpack.c.h.b16 %v775
  %v1076 = vunpack.c.l.b16 %v776
  %v1077 = vunpack.c.h.b16 %v776
  %v1078 = vunpack.c.l.b16 %v777
  %v1079 = vunpack.c.h.b16 %v777
  %v1080 = vunpack.c.l.b16 %v778
  %v1081 = vunpack.c.h.b16 %v778
  %v1082 = vunpack.c.l.b16 %v779
  %v1083 = vunpack.c.h.b16 %v779
  %v1084 = vunpack.c.l.b16 %v780
  %v1085 = vunpack.c.h.b16 %v780
  %v1086 = vunpack.c.l.b16 %v781
  %v1087 = vunpack.c.h.b16 %v781
  %v1088 = vunpack.c.l.b16 %v782
  %v1089 = vunpack.c.h.b16 %v782
  %v1090 = vunpack.c.l.b16 %v783
  %v1091 = vunpack.c.h.b16 %v783
  %v1092 = vunpack.c.l.b16 %v784
  %v1093 = vunpack.c.h.b16 %v784
  %v1094 = vunpack.c.l.b16 %v785
  %v1095 = vunpack.c.h.b16 %v785
  %v1096 = vunpack.c.l.b16 %v786
  %v1097 = vunpack.c.h.b16 %v786
  %v1098 = vunpack.c.l.b16 %v787
  %v1099 = vunpack.c.h.b16 %v787
  %v1100 = vunpack.c.l.b16 %v788
  %v1101 = vunpack.c.h.b16 %v788
  %v1102 = vunpack.c.l.b16 %v789
  %v1103 = vunpack.c.h.b16 %v789
  %v1104 = vunpack.c.l.b16 %v790
  %v1105 = vunpack.c.h.b16 %v790
  %v1106 = vunpack.c.l.b16 %v791
  %v1107 = vunpack.c.h.b16 %v791
  %v1108 = vunpack.c.l.b16 %v792
  %v1109 = vunpack.c.h.b16 %v792
  %v1110 = vunpack.c.l.b16 %v793
  %v1111 = vunpack.c.h.b16 %v793
  %v1112 = vunpack.c.l.b16 %v794
  %v1113 = vunpack.c.h.b16 %v794
  %v1114 = vunpack.c.l.b16 %v795
  %v1115 = vunpack.c.h.b16 %v795
  %v1116 = vunpack.c.l.b16 %v796
  %v1117 = vunpack.c.h.b16 %v796
  %v1118 = vunpack.c.l.b16 %v797
  %v1119 = vunpack.c.h.b16 %v797
  %v1120 = vunpack.c.l.b16 %v798
  %v1121 = vunpack.c.h.b16 %v798
  %v1122 = vunpack.c.l.b16 %v799
  %v1123 = vunpack.c.h.b16 %v799
  %v1124 = vunpack.c.l.b16 %v800
  %v1125 = vunpack.c.h.b16 %v800
  %v1126 = vunpack.c.l.b16 %v801
  %v1127 = vunpack.c.h.b16 %v801
  %v1128 = vunpack.c.l.b16 %v802
  %v1129 = vunpack.c.h.b16 %v802
  %v1130 = vunpack.c.l.b16 %v803
  %v1131 = vunpack.c.h.b16 %v803
  %v1132 = vunpack.c.l.b16 %v804
  %v1133 = vunpack.c.h.b16 %v804
  %v1134 = vunpack.c.l.b16 %v805
  %v1135 = vunpack.c.h.b16 %v805
  %v1136 = vunpack.c.l.b16 %v806
  %v1137 = vunpack.c.h.b16 %v806
  %v1138 = vunpack.c.l.b16 %v807
  %v1139 = vunpack.c.h.b16 %v807
  %v1140 = vunpack.c.l.b16 %v808
  %v1141 = vunpack.c.h.b16 %v808
  %v1142 = vunpack.c.l.b16 %v809
  %v1143 = vunpack.c.h.b16 %v809
  %v1144 = vunpack.c.l.b16 %v810
  %v1145 = vunpack.c.h.b16 %v810
  %v1146 = vunpack.c.l.b16 %v811
  %v1147 = vunpack.c.h.b16 %v811
  %v1148 = vunpack.c.l.b16 %v812
  %v1149 = vunpack.c.h.b16 %v812
  %v1150 = vunpack.c.l.b16 %v813
  %v1151 = vunpack.c.h.b16 %v813
  %v1152 = vunpack.c.l.b16 %v814
  %v1153 = vunpack.c.h.b16 %v814
  %v1154 = vunpack.c.l.b16 %v815
  %v1155 = vunpack.c.h.b16 %v815
  %v1156 = vunpack.c.l.b16 %v816
  %v1157 = vunpack.c.h.b16 %v816
  %v1158 = vunpack.c.l.b16 %v817
  %v1159 = vunpack.c.h.b16 %v817
  %v1160 = vunpack.c.l.b16 %v818
  %v1161 = vunpack.c.h.b16 %v818
  %v1162 = vunpack.c.l.b16 %v819
  %v1163 = vunpack.c.h.b16 %v819
  %v1164 = vunpack.c.l.b16 %v820
  %v1165 = vunpack.c.h.b16 %v820
  %v1166 = vunpack.c.l.b16 %v821
  %v1167 = vunpack.c.h.b16 %v821
  %v1168 = vunpack.c.l.b16 %v822
  %v1169 = vunpack.c.h.b16 %v822
  %v1170 = vunpack.c.l.b16 %v823
  %v1171 = vunpack.c.h.b16 %v823
  %v1172 = vunpack.c.l.b16 %v824
  %v1173 = vunpack.c.h.b16 %v824
  %v1174 = vunpack.c.l.b16 %v825
  %v1175 = vunpack.c.h.b16 %v825
  %v1176 = vunpack.c.l.b16 %v826
  %v1177 = vunpack.c.h.b16 %v826
  %v1178 = vunpack.c.l.b16 %v827
  %v1179 = vunpack.c.h.b16 %v827
  %v1180 = vunpack.c.l.b16 %v828
  %v1181 = vunpack.c.h.b16 %v828
  %v1182 = vunpack.c.l.b16 %v829
  %v1183 = vunpack.c.h.b16 %v829
  %v1184 = vunpack.c.l.b16 %v830
  %v1185 = vunpack.c.h.b16 %v830
  %v1186 = vunpack.c.l.b16 %v831
  %v1187 = vunpack.c.h.b16 %v831
  %v1188 = vunpack.c.l.b16 %v832
  %v1189 = vunpack.c.h.b16 %v832
  %v1190 = vunpack.c.l.b16 %v833
  %v1191 = vunpack.c.h.b16 %v833
  %v1192 = vunpack.c.l.b16 %v834
  %v1193 = vunpack.c.h.b16 %v834
  %v1194 = vunpack.c.l.b16 %v835
  %v1195 = vunpack.c.h.b16 %v835
  %v1196 = vunpack.c.l.b16 %v836
  %v1197 = vunpack.c.h.b16 %v836
  %v1198 = vunpack.c.l.b16 %v837
  %v1199 = vunpack.c.h.b16 %v837
  %v1200 = vunpack.c.l.b16 %v838
  %v1201 = vunpack.c.h.b16 %v838
  %v1202 = vunpack.c.l.b16 %v839
  %v1203 = vunpack.c.h.b16 %v839
  %v1204 = vunpack.c.l.b16 %v840
  %v1205 = vunpack.c.h.b16 %v840
  %v1206 = vunpack.c.l.b16 %v841
  %v1207 = vunpack.c.h.b16 %v841
  %v1208 = vunpack.c.l.b16 %v842
  %v1209 = vunpack.c.h.b16 %v842
  %v1210 = vunpack.c.l.b16 %v843
  %v1211 = vunpack.c.h.b16 %v843
  %v1212 = vunpack.c.l.b16 %v844
  %v1213 = vunpack.c.h.b16 %v844
  %v1214 = vunpack.c.l.b16 %v845
  %v1215 = vunpack.c.h.b16 %v845
  %v1216 = vunpack.c.l.b16 %v846
  %v1217 = vunpack.c.h.b16 %v846
  %v1218 = vunpack.c.l.b16 %v847
  %v1219 = vunpack.c.h.b16 %v847
  %v1220 = vunpack.c.l.b16 %v848
  %v1221 = vunpack.c.h.b16 %v848
  %v1222 = vunpack.c.l.b16 %v849
  %v1223 = vunpack.c.h.b16 %v849
  %v1224 = vunpack.c.l.b16 %v850
  %v1225 = vunpack.c.h.b16 %v850
  %v1226 = vunpack.c.l.b16 %v851
  %v1227 = vunpack.c.h.b16 %v851
  %v1228 = vunpack.c.l.b16 %v852
  %v1229 = vunpack.c.h.b16 %v852
  %v1230 = vunpack.c.l.b16 %v853
  %v1231 = vunpack.c.h.b16 %v853
  %v1232 = vunpack.c.l.b16 %v854
  %v1233 = vunpack.c.h.b16 %v854
  %v1234 = vunpack.c.l.b16 %v855
  %v1235 = vunpack.c.h.b16 %v855
  %v1236 = vunpack.c.l.b16 %v856
  %v1237 = vunpack.c.h.b16 %v856
  %v1238 = vunpack.c.l.b16 %v857
  %v1239 = vunpack.c.h.b16 %v857
  %v1240 = vunpack.c.l.b16 %v858
  %v1241 = vunpack.c.h.b16 %v858
  %v1242 = vunpack.c.l.b16 %v859
  %v1243 = vunpack.c.h.b16 %v859
  %v1244 = vpack.c.b16 %v992, %v988
  %v1245 = vpack.c.b16 %v993, %v989
  %v1246 = vpack.c.b16 %v994, %v990
  %v1247 = vpack.c.b16 %v995, %v991
  %v1248 = vpack.c.b16 %v1000, %v996
  %v1249 = vpack.c.b16 %v1001, %v997
  %v1250 = vpack.c.b16 %v1002, %v998
  %v1251 = vpack.c.b16 %v1003, %v999
  %v1252 = vpack.c.b16 %v1008, %v1004
  %v1253 = vpack.c.b16 %v1009, %v1005
  %v1254 = vpack.c.b16 %v1010, %v1006
  %v1255 = vpack.c.b16 %v1011, %v1007
  %v1256 = vpack.c.b16 %v1016, %v1012
  %v1257 = vpack.c.b16 %v1017, %v1013
  %v1258 = vpack.c.b16 %v1018, %v1014
  %v1259 = vpack.c.b16 %v1019, %v1015
  %v1260 = vpack.c.b16 %v1024, %v1020
  %v1261 = vpack.c.b16 %v1025, %v1021
  %v1262 = vpack.c.b16 %v1026, %v1022
  %v1263 = vpack.c.b16 %v1027, %v1023
  %v1264 = vpack.c.b16 %v1032, %v1028
  %v1265 = vpack.c.b16 %v1033, %v1029
  %v1266 = vpack.c.b16 %v1034, %v1030
  %v1267 = vpack.c.b16 %v1035, %v1031
  %v1268 = vpack.c.b16 %v1040, %v1036
  %v1269 = vpack.c.b16 %v1041, %v1037
  %v1270 = vpack.c.b16 %v1042, %v1038
  %v1271 = vpack.c.b16 %v1043, %v1039
  %v1272 = vpack.c.b16 %v1048, %v1044
  %v1273 = vpack.c.b16 %v1049, %v1045
  %v1274 = vpack.c.b16 %v1050, %v1046
  %v1275 = vpack.c.b16 %v1051, %v1047
  %v1276 = vpack.c.b16 %v1056, %v1052
  %v1277 = vpack.c.b16 %v1057, %v1053
  %v1278 = vpack.c.b16 %v1058, %v1054
  %v1279 = vpack.c.b16 %v1059, %v1055
  %v1280 = vpack.c.b16 %v1064, %v1060
  %v1281 = vpack.c.b16 %v1065, %v1061
  %v1282 = vpack.c.b16 %v1066, %v1062
  %v1283 = vpack.c.b16 %v1067, %v1063
  %v1284 = vpack.c.b16 %v1072, %v1068
  %v1285 = vpack.c.b16 %v1073, %v1069
  %v1286 = vpack.c.b16 %v1074, %v1070
  %v1287 = vpack.c.b16 %v1075, %v1071
  %v1288 = vpack.c.b16 %v1080, %v1076
  %v1289 = vpack.c.b16 %v1081, %v1077
  %v1290 = vpack.c.b16 %v1082, %v1078
  %v1291 = vpack.c.b16 %v1083, %v1079
  %v1292 = vpack.c.b16 %v1088, %v1084
  %v1293 = vpack.c.b16 %v1089, %v1085
  %v1294 = vpack.c.b16 %v1090, %v1086
  %v1295 = vpack.c.b16 %v1091, %v1087
  %v1296 = vpack.c.b16 %v1096, %v1092
  %v1297 = vpack.c.b16 %v1097, %v1093
  %v1298 = vpack.c.b16 %v1098, %v1094
  %v1299 = vpack.c.b16 %v1099, %v1095
  %v1300 = vpack.c.b16 %v1104, %v1100
  %v1301 = vpack.c.b16 %v1105, %v1101
  %v1302 = vpack.c.b16 %v1106, %v1102
  %v1303 = vpack.c.b16 %v1107, %v1103
  %v1304 = vpack.c.b16 %v1112, %v1108
  %v1305 = vpack.c.b16 %v1113, %v1109
  %v1306 = vpack.c.b16 %v1114, %v1110
  %v1307 = vpack.c.b16 %v1115, %v1111
  %v1308 = vpack.c.b16 %v1120, %v1116
  %v1309 = vpack.c.b16 %v1121, %v1117
  %v1310 = vpack.c.b16 %v1122, %v1118
  %v1311 = vpack.c.b16 %v1123, %v1119
  %v1312 = vpack.c.b16 %v1128, %v1124
  %v1313 = vpack.c.b16 %v1129, %v1125
  %v1314 = vpack.c.b16 %v1130, %v1126
  %v1315 = vpack.c.b16 %v1131, %v1127
  %v1316 = vpack.c.b16 %v1136, %v1132
  %v1317 = vpack.c.b16 %v1137, %v1133
  %v1318 = vpack.c.b16 %v1138, %v1134
  %v1319 = vpack.c.b16 %v1139, %v1135
  %v1320 = vpack.c.b16 %v1144, %v1140
  %v1321 = vpack.c.b16 %v1145, %v1141
  %v1322 = vpack.c.b16 %v1146, %v1142
  %v1323 = vpack.c.b16 %v1147, %v1143
  %v1324 = vpack.c.b16 %v1152, %v1148
  %v1325 = vpack.c.b16 %v1153, %v1149
  %v1326 = vpack.c.b16 %v1154, %v1150
  %v1327 = vpack.c.b16 %v1155, %v1151
  %v1328 = vpack.c.b16 %v1160, %v1156
  %v1329 = vpack.c.b16 %v1161, %v1157
  %v1330 = vpack.c.b16 %v1162, %v1158
  %v1331 = vpack.c.b16 %v1163, %v1159
  %v1332 = vpack.c.b16 %v1168, %v1164
  %v1333 = vpack.c.b16 %v1169, %v1165
  %v1334 = vpack.c.b16 %v1170, %v1166
  %v1335 = vpack.c.b16 %v1171, %v1167
  %v1336 = vpack.c.b16 %v1176, %v1172
  %v1337 = vpack.c.b16 %v1177, %v1173
  %v1338 = vpack.c.b16 %v1178, %v1174
  %v1339 = vpack.c.b16 %v1179, %v1175
  %v1340 = vpack.c.b16 %v1184, %v1180
  %v1341 = vpack.c.b16 %v1185, %v1181
  %v1342 = vpack.c.b16 %v1186, %v1182
  %v1343 = vpack.c.b16 %v1187, %v1183
  %v1344 = vpack.c.b16 %v1192, %v1188
  %v1345 = vpack.c.b16 %v1193, %v1189
  %v1346 = vpack.c.b16 %v1194, %v1190
  %v1347 = vpack.c.b16 %v1195, %v1191
  %v1348 = vpack.c.b16 %v1200, %v1196
  %v1349 = vpack.c.b16 %v1201, %v1197
  %v1350 = vpack.c.b16 %v1202, %v1198
  %v1351 = vpack.c.b16 %v1203, %v1199
  %v1352 = vpack.c.b16 %v1208, %v1204
  %v1353 = vpack.c.b16 %v1209, %v1205
  %v1354 = vpack.c.b16 %v1210, %v1206
  %v1355 = vpack.c.b16 %v1211, %v1207
  %v1356 = vpack.c.b16 %v1216, %v1212
  %v1357 = vpack.c.b16 %v1217, %v1213
  %v1358 = vpack.c.b16 %v1218, %v1214
  %v1359 = vpack.c.b16 %v1219, %v1215
  %v1360 = vpack.c.b16 %v1224, %v1220
  %v1361 = vpack.c.b16 %v1225, %v1221
  %v1362 = vpack.c.b16 %v1226, %v1222
  %v1363 = vpack.c.b16 %v1227, %v1223
  %v1364 = vpack.c.b16 %v1232, %v1228
  %v1365 = vpack.c.b16 %v1233, %v1229
  %v1366 = vpack.c.b16 %v1234, %v1230
  %v1367 = vpack.c.b16 %v1235, %v1231
  %v1368 = vpack.c.b16 %v1240, %v1236
  %v1369 = vpack.c.b16 %v1241, %v1237
  %v1370 = vpack.c.b16 %v1242, %v1238
  %v1371 = vpack.c.b16 %v1243, %v1239
  %1500 = vmatprep.subr.bf16.mxu0 %v1245
  %1501 = vmatpush1.bf16.msra.mxu0 %v1244
  %1502 = vmatprep.subr.bf16.mxu0 %v1249
  %1503 = vmatpush1.bf16.msra.mxu0 %v1248
  %1504 = vmatprep.subr.bf16.mxu0 %v1253
  %1505 = vmatpush1.bf16.msra.mxu0 %v1252
  %1506 = vmatprep.subr.bf16.mxu0 %v1257
  %1507 = vmatpush1.bf16.msra.mxu0 %v1256
  %1508 = vmatprep.subr.bf16.mxu0 %v1261
  %1509 = vmatpush1.bf16.msra.mxu0 %v1260
  %1510 = vmatprep.subr.bf16.mxu0 %v1265
  %1511 = vmatpush1.bf16.msra.mxu0 %v1264
  %1512 = vmatprep.subr.bf16.mxu0 %v1269
  %1513 = vmatpush1.bf16.msra.mxu0 %v1268
  %1514 = vmatprep.subr.bf16.mxu0 %v1273
  %1515 = vmatpush1.bf16.msra.mxu0 %v1272
  %1516 = vmatprep.subr.bf16.mxu0 %v1277
  %1517 = vmatpush1.bf16.msra.mxu0 %v1276
  %1518 = vmatprep.subr.bf16.mxu0 %v1281
  %1519 = vmatpush1.bf16.msra.mxu0 %v1280
  %1520 = vmatprep.subr.bf16.mxu0 %v1285
  %1521 = vmatpush1.bf16.msra.mxu0 %v1284
  %1522 = vmatprep.subr.bf16.mxu0 %v1289
  %1523 = vmatpush1.bf16.msra.mxu0 %v1288
  %1524 = vmatprep.subr.bf16.mxu0 %v1293
  %1525 = vmatpush1.bf16.msra.mxu0 %v1292
  %1526 = vmatprep.subr.bf16.mxu0 %v1297
  %1527 = vmatpush1.bf16.msra.mxu0 %v1296
  %1528 = vmatprep.subr.bf16.mxu0 %v1301
  %1529 = vmatpush1.bf16.msra.mxu0 %v1300
  %1530 = vmatprep.subr.bf16.mxu0 %v1305
  %1531 = vmatpush1.bf16.msra.mxu0 %v1304
  %1532 = vmatprep.mubr.bf16.mxu0 %v729
  %1533 = vmatmul.mubr.bf16.gmra.mrb[0].mxu0 %v728
  %v1534 = vpop.f32.mrb[0].mxu0
  %v1535 = vadd.f32 0.0, %v1534
  %v1536 = vpop.f32.mrb[0].mxu0
  %v1537 = vadd.f32 0.0, %v1536
  %v1538 = vpop.f32.mrb[0].mxu0
  %v1539 = vpop.f32.mrb[0].mxu0
  %1540 = vdwg.mxu0
  %1541 = vmatprep.subr.bf16.mxu0 %v1309
  %1542 = vmatpush1.bf16.msra.mxu0 %v1308
  %1543 = vmatprep.subr.bf16.mxu0 %v1313
  %1544 = vmatpush1.bf16.msra.mxu0 %v1312
  %1545 = vmatprep.subr.bf16.mxu0 %v1317
  %1546 = vmatpush1.bf16.msra.mxu0 %v1316
  %1547 = vmatprep.subr.bf16.mxu0 %v1321
  %1548 = vmatpush1.bf16.msra.mxu0 %v1320
  %1549 = vmatprep.subr.bf16.mxu0 %v1325
  %1550 = vmatpush1.bf16.msra.mxu0 %v1324
  %1551 = vmatprep.subr.bf16.mxu0 %v1329
  %1552 = vmatpush1.bf16.msra.mxu0 %v1328
  %1553 = vmatprep.subr.bf16.mxu0 %v1333
  %1554 = vmatpush1.bf16.msra.mxu0 %v1332
  %1555 = vmatprep.subr.bf16.mxu0 %v1337
  %1556 = vmatpush1.bf16.msra.mxu0 %v1336
  %1557 = vmatprep.subr.bf16.mxu0 %v1341
  %1558 = vmatpush1.bf16.msra.mxu0 %v1340
  %1559 = vmatprep.subr.bf16.mxu0 %v1345
  %1560 = vmatpush1.bf16.msra.mxu0 %v1344
  %1561 = vmatprep.subr.bf16.mxu0 %v1349
  %1562 = vmatpush1.bf16.msra.mxu0 %v1348
  %1563 = vmatprep.subr.bf16.mxu0 %v1353
  %1564 = vmatpush1.bf16.msra.mxu0 %v1352
  %1565 = vmatprep.subr.bf16.mxu0 %v1357
  %1566 = vmatpush1.bf16.msra.mxu0 %v1356
  %1567 = vmatprep.subr.bf16.mxu0 %v1361
  %1568 = vmatpush1.bf16.msra.mxu0 %v1360
  %1569 = vmatprep.subr.bf16.mxu0 %v1365
  %1570 = vmatpush1.bf16.msra.mxu0 %v1364
  %1571 = vmatprep.subr.bf16.mxu0 %v1369
  %1572 = vmatpush1.bf16.msra.mxu0 %v1368
  %1573 = vmatprep.mubr.bf16.mxu0 %v731
  %1574 = vmatmul.mubr.bf16.gmra.mrb[0].mxu0 %v730
  %v1575 = vpop.f32.mrb[0].mxu0
  %v1576 = vadd.f32 %v1535, %v1575
  %v1577 = vpop.f32.mrb[0].mxu0
  %v1578 = vadd.f32 %v1537, %v1577
  %v1579 = vpop.f32.mrb[0].mxu0
  %v1580 = vpop.f32.mrb[0].mxu0
  %1581 = vdwg.mxu0
  %1582 = vmatprep.subr.bf16.mxu0 %v1247
  %1583 = vmatpush1.bf16.msra.mxu0 %v1246
  %1584 = vmatprep.subr.bf16.mxu0 %v1251
  %1585 = vmatpush1.bf16.msra.mxu0 %v1250
  %1586 = vmatprep.subr.bf16.mxu0 %v1255
  %1587 = vmatpush1.bf16.msra.mxu0 %v1254
  %1588 = vmatprep.subr.bf16.mxu0 %v1259
  %1589 = vmatpush1.bf16.msra.mxu0 %v1258
  %1590 = vmatprep.subr.bf16.mxu0 %v1263
  %1591 = vmatpush1.bf16.msra.mxu0 %v1262
  %1592 = vmatprep.subr.bf16.mxu0 %v1267
  %1593 = vmatpush1.bf16.msra.mxu0 %v1266
  %1594 = vmatprep.subr.bf16.mxu0 %v1271
  %1595 = vmatpush1.bf16.msra.mxu0 %v1270
  %1596 = vmatprep.subr.bf16.mxu0 %v1275
  %1597 = vmatpush1.bf16.msra.mxu0 %v1274
  %1598 = vmatprep.subr.bf16.mxu0 %v1279
  %1599 = vmatpush1.bf16.msra.mxu0 %v1278
  %1600 = vmatprep.subr.bf16.mxu0 %v1283
  %1601 = vmatpush1.bf16.msra.mxu0 %v1282
  %1602 = vmatprep.subr.bf16.mxu0 %v1287
  %1603 = vmatpush1.bf16.msra.mxu0 %v1286
  %1604 = vmatprep.subr.bf16.mxu0 %v1291
  %1605 = vmatpush1.bf16.msra.mxu0 %v1290
  %1606 = vmatprep.subr.bf16.mxu0 %v1295
  %1607 = vmatpush1.bf16.msra.mxu0 %v1294
  %1608 = vmatprep.subr.bf16.mxu0 %v1299
  %1609 = vmatpush1.bf16.msra.mxu0 %v1298
  %1610 = vmatprep.subr.bf16.mxu0 %v1303
  %1611 = vmatpush1.bf16.msra.mxu0 %v1302
  %1612 = vmatprep.subr.bf16.mxu0 %v1307
  %1613 = vmatpush1.bf16.msra.mxu0 %v1306
  %1614 = vmatprep.mubr.bf16.mxu0 %v729
  %1615 = vmatmul.mubr.bf16.gmra.mrb[0].mxu0 %v728
  %v1616 = vpop.f32.mrb[0].mxu0
  %v1617 = vadd.f32 0.0, %v1616
  %v1618 = vpop.f32.mrb[0].mxu0
  %v1619 = vadd.f32 0.0, %v1618
  %v1620 = vpop.f32.mrb[0].mxu0
  %v1621 = vpop.f32.mrb[0].mxu0
  %1622 = vdwg.mxu0
  %1623 = vmatprep.subr.bf16.mxu0 %v1311
  %1624 = vmatpush1.bf16.msra.mxu0 %v1310
  %1625 = vmatprep.subr.bf16.mxu0 %v1315
  %1626 = vmatpush1.bf16.msra.mxu0 %v1314
  %1627 = vmatprep.subr.bf16.mxu0 %v1319
  %1628 = vmatpush1.bf16.msra.mxu0 %v1318
  %1629 = vmatprep.subr.bf16.mxu0 %v1323
  %1630 = vmatpush1.bf16.msra.mxu0 %v1322
  %1631 = vmatprep.subr.bf16.mxu0 %v1327
  %1632 = vmatpush1.bf16.msra.mxu0 %v1326
  %1633 = vmatprep.subr.bf16.mxu0 %v1331
  %1634 = vmatpush1.bf16.msra.mxu0 %v1330
  %1635 = vmatprep.subr.bf16.mxu0 %v1335
  %1636 = vmatpush1.bf16.msra.mxu0 %v1334
  %1637 = vmatprep.subr.bf16.mxu0 %v1339
  %1638 = vmatpush1.bf16.msra.mxu0 %v1338
  %1639 = vmatprep.subr.bf16.mxu0 %v1343
  %1640 = vmatpush1.bf16.msra.mxu0 %v1342
  %1641 = vmatprep.subr.bf16.mxu0 %v1347
  %1642 = vmatpush1.bf16.msra.mxu0 %v1346
  %1643 = vmatprep.subr.bf16.mxu0 %v1351
  %1644 = vmatpush1.bf16.msra.mxu0 %v1350
  %1645 = vmatprep.subr.bf16.mxu0 %v1355
  %1646 = vmatpush1.bf16.msra.mxu0 %v1354
  %1647 = vmatprep.subr.bf16.mxu0 %v1359
  %1648 = vmatpush1.bf16.msra.mxu0 %v1358
  %1649 = vmatprep.subr.bf16.mxu0 %v1363
  %1650 = vmatpush1.bf16.msra.mxu0 %v1362
  %1651 = vmatprep.subr.bf16.mxu0 %v1367
  %1652 = vmatpush1.bf16.msra.mxu0 %v1366
  %1653 = vmatprep.subr.bf16.mxu0 %v1371
  %1654 = vmatpush1.bf16.msra.mxu0 %v1370
  %1655 = vmatprep.mubr.bf16.mxu0 %v731
  %1656 = vmatmul.mubr.bf16.gmra.mrb[0].mxu0 %v730
  %v1657 = vpop.f32.mrb[0].mxu0
  %v1658 = vadd.f32 %v1617, %v1657
  %v1659 = vpop.f32.mrb[0].mxu0
  %v1660 = vadd.f32 %v1619, %v1659
  %v1661 = vpop.f32.mrb[0].mxu0
  %v1662 = vpop.f32.mrb[0].mxu0
  %1663 = vdwg.mxu0
  %v1672 = vunpack.c.l.b16 %v720
  %v1673 = vunpack.c.h.b16 %v720
  %v1674 = vunpack.c.l.b16 %v721
  %v1675 = vunpack.c.h.b16 %v721
  %v1676 = vunpack.c.l.b16 %v722
  %v1677 = vunpack.c.h.b16 %v722
  %v1678 = vunpack.c.l.b16 %v723
  %v1679 = vunpack.c.h.b16 %v723
  %v1680 = vunpack.c.l.b16 %v724
  %v1681 = vunpack.c.h.b16 %v724
  %v1682 = vunpack.c.l.b16 %v725
  %v1683 = vunpack.c.h.b16 %v725
  %v1684 = vunpack.c.l.b16 %v726
  %v1685 = vunpack.c.h.b16 %v726
  %v1686 = vunpack.c.l.b16 %v727
  %v1687 = vunpack.c.h.b16 %v727
  %v1688 = vpack.c.b16 %v1676, %v1672
  %v1689 = vpack.c.b16 %v1677, %v1673
  %v1690 = vpack.c.b16 %v1678, %v1674
  %v1691 = vpack.c.b16 %v1679, %v1675
  %v1692 = vpack.c.b16 %v1684, %v1680
  %v1693 = vpack.c.b16 %v1685, %v1681
  %v1694 = vpack.c.b16 %v1686, %v1682
  %v1695 = vpack.c.b16 %v1687, %v1683
  %vm1704 = vcmask 261120
  %v1706 = vsel %vm1704, %v719, 0
  %1708 = vmatprep.subr.bf16.mxu0 %v1689
  %1709 = vmatpush1.bf16.msra.mxu0 %v1688
  %1710 = vmatprep.subr.bf16.mxu0 %v1693
  %1711 = vmatpush1.bf16.msra.mxu0 %v1692
  %1712 = vmatprep.subr.bf16.mxu0 0
  %1713 = vmatpush1.bf16.msra.mxu0 0
  %1714 = vmatprep.subr.bf16.mxu0 0
  %1715 = vmatpush1.bf16.msra.mxu0 0
  %1716 = vmatprep.subr.bf16.mxu0 0
  %1717 = vmatpush1.bf16.msra.mxu0 0
  %1718 = vmatprep.subr.bf16.mxu0 0
  %1719 = vmatpush1.bf16.msra.mxu0 0
  %1720 = vmatprep.subr.bf16.mxu0 0
  %1721 = vmatpush1.bf16.msra.mxu0 0
  %1722 = vmatprep.subr.bf16.mxu0 0
  %1723 = vmatpush1.bf16.msra.mxu0 0
  %1724 = vmatprep.subr.bf16.mxu0 0
  %1725 = vmatpush1.bf16.msra.mxu0 0
  %1726 = vmatprep.subr.bf16.mxu0 0
  %1727 = vmatpush1.bf16.msra.mxu0 0
  %1728 = vmatprep.subr.bf16.mxu0 0
  %1729 = vmatpush1.bf16.msra.mxu0 0
  %1730 = vmatprep.subr.bf16.mxu0 0
  %1731 = vmatpush1.bf16.msra.mxu0 0
  %1732 = vmatprep.subr.bf16.mxu0 0
  %1733 = vmatpush1.bf16.msra.mxu0 0
  %1734 = vmatprep.subr.bf16.mxu0 0
  %1735 = vmatpush1.bf16.msra.mxu0 0
  %1736 = vmatprep.subr.bf16.mxu0 0
  %1737 = vmatpush1.bf16.msra.mxu0 0
  %1738 = vmatprep.subr.bf16.mxu0 0
  %1739 = vmatpush1.bf16.msra.mxu0 0
  %1740 = vmatprep.mubr.bf16.mxu0 0
  %1741 = vmatmul.mubr.bf16.gmra.mrb[0].mxu0 %v1706
  %v1742 = vpop.f32.mrb[0].mxu0
  %v1743 = vadd.f32 %v1576, %v1742
  %v1744 = vpop.f32.mrb[0].mxu0
  %v1745 = vadd.f32 %v1578, %v1744
  %v1746 = vpop.f32.mrb[0].mxu0
  %v1747 = vpop.f32.mrb[0].mxu0
  %1748 = vdwg.mxu0
  %1749 = vmatprep.subr.bf16.mxu0 %v1691
  %1750 = vmatpush1.bf16.msra.mxu0 %v1690
  %1751 = vmatprep.subr.bf16.mxu0 %v1695
  %1752 = vmatpush1.bf16.msra.mxu0 %v1694
  %1753 = vmatprep.subr.bf16.mxu0 0
  %1754 = vmatpush1.bf16.msra.mxu0 0
  %1755 = vmatprep.subr.bf16.mxu0 0
  %1756 = vmatpush1.bf16.msra.mxu0 0
  %1757 = vmatprep.subr.bf16.mxu0 0
  %1758 = vmatpush1.bf16.msra.mxu0 0
  %1759 = vmatprep.subr.bf16.mxu0 0
  %1760 = vmatpush1.bf16.msra.mxu0 0
  %1761 = vmatprep.subr.bf16.mxu0 0
  %1762 = vmatpush1.bf16.msra.mxu0 0
  %1763 = vmatprep.subr.bf16.mxu0 0
  %1764 = vmatpush1.bf16.msra.mxu0 0
  %1765 = vmatprep.subr.bf16.mxu0 0
  %1766 = vmatpush1.bf16.msra.mxu0 0
  %1767 = vmatprep.subr.bf16.mxu0 0
  %1768 = vmatpush1.bf16.msra.mxu0 0
  %1769 = vmatprep.subr.bf16.mxu0 0
  %1770 = vmatpush1.bf16.msra.mxu0 0
  %1771 = vmatprep.subr.bf16.mxu0 0
  %1772 = vmatpush1.bf16.msra.mxu0 0
  %1773 = vmatprep.subr.bf16.mxu0 0
  %1774 = vmatpush1.bf16.msra.mxu0 0
  %1775 = vmatprep.subr.bf16.mxu0 0
  %1776 = vmatpush1.bf16.msra.mxu0 0
  %1777 = vmatprep.subr.bf16.mxu0 0
  %1778 = vmatpush1.bf16.msra.mxu0 0
  %1779 = vmatprep.subr.bf16.mxu0 0
  %1780 = vmatpush1.bf16.msra.mxu0 0
  %1781 = vmatprep.mubr.bf16.mxu0 0
  %1782 = vmatmul.mubr.bf16.gmra.mrb[0].mxu0 %v1706
  %v1783 = vpop.f32.mrb[0].mxu0
  %v1784 = vadd.f32 %v1658, %v1783
  %v1785 = vpop.f32.mrb[0].mxu0
  %v1786 = vadd.f32 %v1660, %v1785
  %v1787 = vpop.f32.mrb[0].mxu0
  %v1788 = vpop.f32.mrb[0].mxu0
  %1789 = vdwg.mxu0
  %v1791 = vlaneseq
  %v1792 = vshrl.u32 %v1791, 7
  %v1793 = vsub.s32 0, %v1792
  %v1794 = vrot.slane %v34, %v1793
  %v1795 = vlaneseq
  %v1796 = vshrl.u32 %v1795, 7
  %v1797 = vsub.s32 1, %v1796
  %v1798 = vrot.slane %v34, %v1797
  %v1799 = vlaneseq
  %v1800 = vshrl.u32 %v1799, 7
  %v1801 = vsub.s32 2, %v1800
  %v1802 = vrot.slane %v34, %v1801
  %v1803 = vlaneseq
  %v1804 = vshrl.u32 %v1803, 7
  %v1805 = vsub.s32 3, %v1804
  %v1806 = vrot.slane %v34, %v1805
  %v1811 = vadd.f32 %v1743, %v1794
  %v1812 = vadd.f32 %v1745, %v1798
  %v1813 = vadd.f32 %v1784, %v1802
  %v1814 = vadd.f32 %v1786, %v1806
  %v1815 = vmax.f32 %v1811, 0.0
  %v1816 = vmax.f32 %v1812, 0.0
  %v1817 = vmax.f32 %v1813, 0.0
  %v1818 = vmax.f32 %v1814, 0.0
  %v1819 = vpack.c.bf16 %v1815, %v1815
  %v1820 = vpack.c.bf16 %v1816, %v1816
  %v1821 = vpack.c.bf16 %v1817, %v1817
  %v1822 = vpack.c.bf16 %v1818, %v1818
  %v1823 = vld [vmem:[%s6] sm:$0xff]
  %v1824 = vld [vmem:[%s6 + $0x8] sm:$0xff]
  %v1825 = vld [vmem:[%s6 + $0x10] sm:$0xff]
  %v1826 = vld [vmem:[%s6 + $0x18] sm:$0xff]
  %v1827 = vld [vmem:[%s6 + $0x20] sm:$0xff]
  %v1828 = vld [vmem:[%s6 + $0x28] sm:$0xff]
  %v1829 = vld [vmem:[%s6 + $0x30] sm:$0xff]
  %v1830 = vld [vmem:[%s6 + $0x38] sm:$0xff]
  %v1831 = vld [vmem:[%s6 + $0x40] sm:$0xff]
  %v1832 = vld [vmem:[%s6 + $0x48] sm:$0xff]
  %v1833 = vld [vmem:[%s6 + $0x50] sm:$0xff]
  %v1834 = vld [vmem:[%s6 + $0x58] sm:$0xff]
  %v1835 = vld [vmem:[%s6 + $0x60] sm:$0xff]
  %v1836 = vld [vmem:[%s6 + $0x68] sm:$0xff]
  %v1837 = vld [vmem:[%s6 + $0x70] sm:$0xff]
  %v1838 = vld [vmem:[%s6 + $0x78] sm:$0xff]
  %v1839 = vld [vmem:[%s6 + $0x80] sm:$0xff]
  %v1840 = vld [vmem:[%s6 + $0x88] sm:$0xff]
  %v1841 = vld [vmem:[%s6 + $0x90] sm:$0xff]
  %v1842 = vld [vmem:[%s6 + $0x98] sm:$0xff]
  %v1843 = vld [vmem:[%s6 + $0xa0] sm:$0xff]
  %v1844 = vld [vmem:[%s6 + $0xa8] sm:$0xff]
  %v1845 = vld [vmem:[%s6 + $0xb0] sm:$0xff]
  %v1846 = vld [vmem:[%s6 + $0xb8] sm:$0xff]
  %v1847 = vld [vmem:[%s6 + $0xc0] sm:$0xff]
  %v1848 = vld [vmem:[%s6 + $0xc8] sm:$0xff]
  %v1849 = vld [vmem:[%s6 + $0xd0] sm:$0xff]
  %v1850 = vld [vmem:[%s6 + $0xd8] sm:$0xff]
  %v1851 = vld [vmem:[%s6 + $0xe0] sm:$0xff]
  %v1852 = vld [vmem:[%s6 + $0xe8] sm:$0xff]
  %v1853 = vld [vmem:[%s6 + $0xf0] sm:$0xff]
  %v1854 = vld [vmem:[%s6 + $0xf8] sm:$0xff]
  %v1855 = vld [vmem:[%s6 + $0x100] sm:$0xff]
  %v1856 = vld [vmem:[%s6 + $0x108] sm:$0xff]
  %v1857 = vld [vmem:[%s6 + $0x110] sm:$0xff]
  %v1858 = vld [vmem:[%s6 + $0x118] sm:$0xff]
  %v1859 = vld [vmem:[%s6 + $0x120] sm:$0xff]
  %v1860 = vld [vmem:[%s6 + $0x128] sm:$0xff]
  %v1861 = vld [vmem:[%s6 + $0x130] sm:$0xff]
  %v1862 = vld [vmem:[%s6 + $0x138] sm:$0xff]
  %v1863 = vld [vmem:[%s6 + $0x140] sm:$0xff]
  %v1864 = vld [vmem:[%s6 + $0x148] sm:$0xff]
  %v1865 = vld [vmem:[%s6 + $0x150] sm:$0xff]
  %v1866 = vld [vmem:[%s6 + $0x158] sm:$0xff]
  %v1867 = vld [vmem:[%s6 + $0x160] sm:$0xff]
  %v1868 = vld [vmem:[%s6 + $0x168] sm:$0xff]
  %v1869 = vld [vmem:[%s6 + $0x170] sm:$0xff]
  %v1870 = vld [vmem:[%s6 + $0x178] sm:$0xff]
  %v1871 = vld [vmem:[%s6 + $0x180] sm:$0xff]
  %v1872 = vld [vmem:[%s6 + $0x188] sm:$0xff]
  %v1873 = vld [vmem:[%s6 + $0x190] sm:$0xff]
  %v1874 = vld [vmem:[%s6 + $0x198] sm:$0xff]
  %v1875 = vld [vmem:[%s6 + $0x1a0] sm:$0xff]
  %v1876 = vld [vmem:[%s6 + $0x1a8] sm:$0xff]
  %v1877 = vld [vmem:[%s6 + $0x1b0] sm:$0xff]
  %v1878 = vld [vmem:[%s6 + $0x1b8] sm:$0xff]
  %v1879 = vld [vmem:[%s6 + $0x1c0] sm:$0xff]
  %v1880 = vld [vmem:[%s6 + $0x1c8] sm:$0xff]
  %v1881 = vld [vmem:[%s6 + $0x1d0] sm:$0xff]
  %v1882 = vld [vmem:[%s6 + $0x1d8] sm:$0xff]
  %v1883 = vld [vmem:[%s6 + $0x1e0] sm:$0xff]
  %v1884 = vld [vmem:[%s6 + $0x1e8] sm:$0xff]
  %v1885 = vld [vmem:[%s6 + $0x1f0] sm:$0xff]
  %v1886 = vld [vmem:[%s6 + $0x1f8] sm:$0xff]
  %v1888 = vlaneseq
  %v1889 = vshrl.u32 %v1888, 7
  %v1890 = vsub.s32 0, %v1889
  %v1891 = vrot.slane %v35, %v1890
  %v1892 = vlaneseq
  %v1893 = vshrl.u32 %v1892, 7
  %v1894 = vsub.s32 1, %v1893
  %v1895 = vrot.slane %v35, %v1894
  %v1962 = vunpack.c.l.b16 %v1823
  %v1963 = vunpack.c.h.b16 %v1823
  %v1964 = vunpack.c.l.b16 %v1824
  %v1965 = vunpack.c.h.b16 %v1824
  %v1966 = vunpack.c.l.b16 %v1825
  %v1967 = vunpack.c.h.b16 %v1825
  %v1968 = vunpack.c.l.b16 %v1826
  %v1969 = vunpack.c.h.b16 %v1826
  %v1970 = vunpack.c.l.b16 %v1827
  %v1971 = vunpack.c.h.b16 %v1827
  %v1972 = vunpack.c.l.b16 %v1828
  %v1973 = vunpack.c.h.b16 %v1828
  %v1974 = vunpack.c.l.b16 %v1829
  %v1975 = vunpack.c.h.b16 %v1829
  %v1976 = vunpack.c.l.b16 %v1830
  %v1977 = vunpack.c.h.b16 %v1830
  %v1978 = vunpack.c.l.b16 %v1831
  %v1979 = vunpack.c.h.b16 %v1831
  %v1980 = vunpack.c.l.b16 %v1832
  %v1981 = vunpack.c.h.b16 %v1832
  %v1982 = vunpack.c.l.b16 %v1833
  %v1983 = vunpack.c.h.b16 %v1833
  %v1984 = vunpack.c.l.b16 %v1834
  %v1985 = vunpack.c.h.b16 %v1834
  %v1986 = vunpack.c.l.b16 %v1835
  %v1987 = vunpack.c.h.b16 %v1835
  %v1988 = vunpack.c.l.b16 %v1836
  %v1989 = vunpack.c.h.b16 %v1836
  %v1990 = vunpack.c.l.b16 %v1837
  %v1991 = vunpack.c.h.b16 %v1837
  %v1992 = vunpack.c.l.b16 %v1838
  %v1993 = vunpack.c.h.b16 %v1838
  %v1994 = vunpack.c.l.b16 %v1839
  %v1995 = vunpack.c.h.b16 %v1839
  %v1996 = vunpack.c.l.b16 %v1840
  %v1997 = vunpack.c.h.b16 %v1840
  %v1998 = vunpack.c.l.b16 %v1841
  %v1999 = vunpack.c.h.b16 %v1841
  %v2000 = vunpack.c.l.b16 %v1842
  %v2001 = vunpack.c.h.b16 %v1842
  %v2002 = vunpack.c.l.b16 %v1843
  %v2003 = vunpack.c.h.b16 %v1843
  %v2004 = vunpack.c.l.b16 %v1844
  %v2005 = vunpack.c.h.b16 %v1844
  %v2006 = vunpack.c.l.b16 %v1845
  %v2007 = vunpack.c.h.b16 %v1845
  %v2008 = vunpack.c.l.b16 %v1846
  %v2009 = vunpack.c.h.b16 %v1846
  %v2010 = vunpack.c.l.b16 %v1847
  %v2011 = vunpack.c.h.b16 %v1847
  %v2012 = vunpack.c.l.b16 %v1848
  %v2013 = vunpack.c.h.b16 %v1848
  %v2014 = vunpack.c.l.b16 %v1849
  %v2015 = vunpack.c.h.b16 %v1849
  %v2016 = vunpack.c.l.b16 %v1850
  %v2017 = vunpack.c.h.b16 %v1850
  %v2018 = vunpack.c.l.b16 %v1851
  %v2019 = vunpack.c.h.b16 %v1851
  %v2020 = vunpack.c.l.b16 %v1852
  %v2021 = vunpack.c.h.b16 %v1852
  %v2022 = vunpack.c.l.b16 %v1853
  %v2023 = vunpack.c.h.b16 %v1853
  %v2024 = vunpack.c.l.b16 %v1854
  %v2025 = vunpack.c.h.b16 %v1854
  %v2026 = vunpack.c.l.b16 %v1855
  %v2027 = vunpack.c.h.b16 %v1855
  %v2028 = vunpack.c.l.b16 %v1856
  %v2029 = vunpack.c.h.b16 %v1856
  %v2030 = vunpack.c.l.b16 %v1857
  %v2031 = vunpack.c.h.b16 %v1857
  %v2032 = vunpack.c.l.b16 %v1858
  %v2033 = vunpack.c.h.b16 %v1858
  %v2034 = vunpack.c.l.b16 %v1859
  %v2035 = vunpack.c.h.b16 %v1859
  %v2036 = vunpack.c.l.b16 %v1860
  %v2037 = vunpack.c.h.b16 %v1860
  %v2038 = vunpack.c.l.b16 %v1861
  %v2039 = vunpack.c.h.b16 %v1861
  %v2040 = vunpack.c.l.b16 %v1862
  %v2041 = vunpack.c.h.b16 %v1862
  %v2042 = vunpack.c.l.b16 %v1863
  %v2043 = vunpack.c.h.b16 %v1863
  %v2044 = vunpack.c.l.b16 %v1864
  %v2045 = vunpack.c.h.b16 %v1864
  %v2046 = vunpack.c.l.b16 %v1865
  %v2047 = vunpack.c.h.b16 %v1865
  %v2048 = vunpack.c.l.b16 %v1866
  %v2049 = vunpack.c.h.b16 %v1866
  %v2050 = vunpack.c.l.b16 %v1867
  %v2051 = vunpack.c.h.b16 %v1867
  %v2052 = vunpack.c.l.b16 %v1868
  %v2053 = vunpack.c.h.b16 %v1868
  %v2054 = vunpack.c.l.b16 %v1869
  %v2055 = vunpack.c.h.b16 %v1869
  %v2056 = vunpack.c.l.b16 %v1870
  %v2057 = vunpack.c.h.b16 %v1870
  %v2058 = vunpack.c.l.b16 %v1871
  %v2059 = vunpack.c.h.b16 %v1871
  %v2060 = vunpack.c.l.b16 %v1872
  %v2061 = vunpack.c.h.b16 %v1872
  %v2062 = vunpack.c.l.b16 %v1873
  %v2063 = vunpack.c.h.b16 %v1873
  %v2064 = vunpack.c.l.b16 %v1874
  %v2065 = vunpack.c.h.b16 %v1874
  %v2066 = vunpack.c.l.b16 %v1875
  %v2067 = vunpack.c.h.b16 %v1875
  %v2068 = vunpack.c.l.b16 %v1876
  %v2069 = vunpack.c.h.b16 %v1876
  %v2070 = vunpack.c.l.b16 %v1877
  %v2071 = vunpack.c.h.b16 %v1877
  %v2072 = vunpack.c.l.b16 %v1878
  %v2073 = vunpack.c.h.b16 %v1878
  %v2074 = vunpack.c.l.b16 %v1879
  %v2075 = vunpack.c.h.b16 %v1879
  %v2076 = vunpack.c.l.b16 %v1880
  %v2077 = vunpack.c.h.b16 %v1880
  %v2078 = vunpack.c.l.b16 %v1881
  %v2079 = vunpack.c.h.b16 %v1881
  %v2080 = vunpack.c.l.b16 %v1882
  %v2081 = vunpack.c.h.b16 %v1882
  %v2082 = vunpack.c.l.b16 %v1883
  %v2083 = vunpack.c.h.b16 %v1883
  %v2084 = vunpack.c.l.b16 %v1884
  %v2085 = vunpack.c.h.b16 %v1884
  %v2086 = vunpack.c.l.b16 %v1885
  %v2087 = vunpack.c.h.b16 %v1885
  %v2088 = vunpack.c.l.b16 %v1886
  %v2089 = vunpack.c.h.b16 %v1886
  %v2090 = vpack.c.b16 %v1964, %v1962
  %v2091 = vpack.c.b16 %v1965, %v1963
  %v2092 = vpack.c.b16 %v1968, %v1966
  %v2093 = vpack.c.b16 %v1969, %v1967
  %v2094 = vpack.c.b16 %v1972, %v1970
  %v2095 = vpack.c.b16 %v1973, %v1971
  %v2096 = vpack.c.b16 %v1976, %v1974
  %v2097 = vpack.c.b16 %v1977, %v1975
  %v2098 = vpack.c.b16 %v1980, %v1978
  %v2099 = vpack.c.b16 %v1981, %v1979
  %v2100 = vpack.c.b16 %v1984, %v1982
  %v2101 = vpack.c.b16 %v1985, %v1983
  %v2102 = vpack.c.b16 %v1988, %v1986
  %v2103 = vpack.c.b16 %v1989, %v1987
  %v2104 = vpack.c.b16 %v1992, %v1990
  %v2105 = vpack.c.b16 %v1993, %v1991
  %v2106 = vpack.c.b16 %v1996, %v1994
  %v2107 = vpack.c.b16 %v1997, %v1995
  %v2108 = vpack.c.b16 %v2000, %v1998
  %v2109 = vpack.c.b16 %v2001, %v1999
  %v2110 = vpack.c.b16 %v2004, %v2002
  %v2111 = vpack.c.b16 %v2005, %v2003
  %v2112 = vpack.c.b16 %v2008, %v2006
  %v2113 = vpack.c.b16 %v2009, %v2007
  %v2114 = vpack.c.b16 %v2012, %v2010
  %v2115 = vpack.c.b16 %v2013, %v2011
  %v2116 = vpack.c.b16 %v2016, %v2014
  %v2117 = vpack.c.b16 %v2017, %v2015
  %v2118 = vpack.c.b16 %v2020, %v2018
  %v2119 = vpack.c.b16 %v2021, %v2019
  %v2120 = vpack.c.b16 %v2024, %v2022
  %v2121 = vpack.c.b16 %v2025, %v2023
  %v2122 = vpack.c.b16 %v2028, %v2026
  %v2123 = vpack.c.b16 %v2029, %v2027
  %v2124 = vpack.c.b16 %v2032, %v2030
  %v2125 = vpack.c.b16 %v2033, %v2031
  %v2126 = vpack.c.b16 %v2036, %v2034
  %v2127 = vpack.c.b16 %v2037, %v2035
  %v2128 = vpack.c.b16 %v2040, %v2038
  %v2129 = vpack.c.b16 %v2041, %v2039
  %v2130 = vpack.c.b16 %v2044, %v2042
  %v2131 = vpack.c.b16 %v2045, %v2043
  %v2132 = vpack.c.b16 %v2048, %v2046
  %v2133 = vpack.c.b16 %v2049, %v2047
  %v2134 = vpack.c.b16 %v2052, %v2050
  %v2135 = vpack.c.b16 %v2053, %v2051
  %v2136 = vpack.c.b16 %v2056, %v2054
  %v2137 = vpack.c.b16 %v2057, %v2055
  %v2138 = vpack.c.b16 %v2060, %v2058
  %v2139 = vpack.c.b16 %v2061, %v2059
  %v2140 = vpack.c.b16 %v2064, %v2062
  %v2141 = vpack.c.b16 %v2065, %v2063
  %v2142 = vpack.c.b16 %v2068, %v2066
  %v2143 = vpack.c.b16 %v2069, %v2067
  %v2144 = vpack.c.b16 %v2072, %v2070
  %v2145 = vpack.c.b16 %v2073, %v2071
  %v2146 = vpack.c.b16 %v2076, %v2074
  %v2147 = vpack.c.b16 %v2077, %v2075
  %v2148 = vpack.c.b16 %v2080, %v2078
  %v2149 = vpack.c.b16 %v2081, %v2079
  %v2150 = vpack.c.b16 %v2084, %v2082
  %v2151 = vpack.c.b16 %v2085, %v2083
  %v2152 = vpack.c.b16 %v2088, %v2086
  %v2153 = vpack.c.b16 %v2089, %v2087
  %2218 = vmatprep.subr.bf16.mxu0 %v2091
  %2219 = vmatpush1.bf16.msra.mxu0 %v2090
  %2220 = vmatprep.subr.bf16.mxu0 %v2093
  %2221 = vmatpush1.bf16.msra.mxu0 %v2092
  %2222 = vmatprep.subr.bf16.mxu0 %v2095
  %2223 = vmatpush1.bf16.msra.mxu0 %v2094
  %2224 = vmatprep.subr.bf16.mxu0 %v2097
  %2225 = vmatpush1.bf16.msra.mxu0 %v2096
  %2226 = vmatprep.subr.bf16.mxu0 %v2099
  %2227 = vmatpush1.bf16.msra.mxu0 %v2098
  %2228 = vmatprep.subr.bf16.mxu0 %v2101
  %2229 = vmatpush1.bf16.msra.mxu0 %v2100
  %2230 = vmatprep.subr.bf16.mxu0 %v2103
  %2231 = vmatpush1.bf16.msra.mxu0 %v2102
  %2232 = vmatprep.subr.bf16.mxu0 %v2105
  %2233 = vmatpush1.bf16.msra.mxu0 %v2104
  %2234 = vmatprep.subr.bf16.mxu0 %v2107
  %2235 = vmatpush1.bf16.msra.mxu0 %v2106
  %2236 = vmatprep.subr.bf16.mxu0 %v2109
  %2237 = vmatpush1.bf16.msra.mxu0 %v2108
  %2238 = vmatprep.subr.bf16.mxu0 %v2111
  %2239 = vmatpush1.bf16.msra.mxu0 %v2110
  %2240 = vmatprep.subr.bf16.mxu0 %v2113
  %2241 = vmatpush1.bf16.msra.mxu0 %v2112
  %2242 = vmatprep.subr.bf16.mxu0 %v2115
  %2243 = vmatpush1.bf16.msra.mxu0 %v2114
  %2244 = vmatprep.subr.bf16.mxu0 %v2117
  %2245 = vmatpush1.bf16.msra.mxu0 %v2116
  %2246 = vmatprep.subr.bf16.mxu0 %v2119
  %2247 = vmatpush1.bf16.msra.mxu0 %v2118
  %2248 = vmatprep.subr.bf16.mxu0 %v2121
  %2249 = vmatpush1.bf16.msra.mxu0 %v2120
  %2250 = vmatprep.mubr.bf16.mxu0 %v1820
  %2251 = vmatmul.mubr.bf16.gmra.mrb[0].mxu0 %v1819
  %v2252 = vpop.f32.mrb[0].mxu0
  %v2253 = vadd.f32 %v1891, %v2252
  %v2254 = vpop.f32.mrb[0].mxu0
  %v2255 = vadd.f32 %v1895, %v2254
  %v2256 = vpop.f32.mrb[0].mxu0
  %v2257 = vpop.f32.mrb[0].mxu0
  %2258 = vdwg.mxu0
  %2259 = vmatprep.subr.bf16.mxu0 %v2123
  %2260 = vmatpush1.bf16.msra.mxu0 %v2122
  %2261 = vmatprep.subr.bf16.mxu0 %v2125
  %2262 = vmatpush1.bf16.msra.mxu0 %v2124
  %2263 = vmatprep.subr.bf16.mxu0 %v2127
  %2264 = vmatpush1.bf16.msra.mxu0 %v2126
  %2265 = vmatprep.subr.bf16.mxu0 %v2129
  %2266 = vmatpush1.bf16.msra.mxu0 %v2128
  %2267 = vmatprep.subr.bf16.mxu0 %v2131
  %2268 = vmatpush1.bf16.msra.mxu0 %v2130
  %2269 = vmatprep.subr.bf16.mxu0 %v2133
  %2270 = vmatpush1.bf16.msra.mxu0 %v2132
  %2271 = vmatprep.subr.bf16.mxu0 %v2135
  %2272 = vmatpush1.bf16.msra.mxu0 %v2134
  %2273 = vmatprep.subr.bf16.mxu0 %v2137
  %2274 = vmatpush1.bf16.msra.mxu0 %v2136
  %2275 = vmatprep.subr.bf16.mxu0 %v2139
  %2276 = vmatpush1.bf16.msra.mxu0 %v2138
  %2277 = vmatprep.subr.bf16.mxu0 %v2141
  %2278 = vmatpush1.bf16.msra.mxu0 %v2140
  %2279 = vmatprep.subr.bf16.mxu0 %v2143
  %2280 = vmatpush1.bf16.msra.mxu0 %v2142
  %2281 = vmatprep.subr.bf16.mxu0 %v2145
  %2282 = vmatpush1.bf16.msra.mxu0 %v2144
  %2283 = vmatprep.subr.bf16.mxu0 %v2147
  %2284 = vmatpush1.bf16.msra.mxu0 %v2146
  %2285 = vmatprep.subr.bf16.mxu0 %v2149
  %2286 = vmatpush1.bf16.msra.mxu0 %v2148
  %2287 = vmatprep.subr.bf16.mxu0 %v2151
  %2288 = vmatpush1.bf16.msra.mxu0 %v2150
  %2289 = vmatprep.subr.bf16.mxu0 %v2153
  %2290 = vmatpush1.bf16.msra.mxu0 %v2152
  %2291 = vmatprep.mubr.bf16.mxu0 %v1822
  %2292 = vmatmul.mubr.bf16.gmra.mrb[0].mxu0 %v1821
  %v2293 = vpop.f32.mrb[0].mxu0
  %v2294 = vadd.f32 %v2253, %v2293
  %v2295 = vpop.f32.mrb[0].mxu0
  %v2296 = vadd.f32 %v2255, %v2295
  %v2297 = vpop.f32.mrb[0].mxu0
  %v2298 = vpop.f32.mrb[0].mxu0
  %2299 = vdwg.mxu0
  %v2300 = vmax.f32 %v2294, 0.0
  %v2301 = vmax.f32 %v2296, 0.0
  %v2302 = vpack.c.bf16 %v2300, %v2300
  %v2303 = vpack.c.bf16 %v2301, %v2301
  %v2304 = vld [vmem:[%s7] sm:$0xf]
  %v2305 = vld [vmem:[%s7 + $0x4] sm:$0xf]
  %v2306 = vld [vmem:[%s7 + $0x8] sm:$0xf]
  %v2307 = vld [vmem:[%s7 + $0xc] sm:$0xf]
  %v2308 = vld [vmem:[%s7 + $0x10] sm:$0xf]
  %v2309 = vld [vmem:[%s7 + $0x14] sm:$0xf]
  %v2310 = vld [vmem:[%s7 + $0x18] sm:$0xf]
  %v2311 = vld [vmem:[%s7 + $0x1c] sm:$0xf]
  %v2312 = vld [vmem:[%s7 + $0x20] sm:$0xf]
  %v2313 = vld [vmem:[%s7 + $0x24] sm:$0xf]
  %v2314 = vld [vmem:[%s7 + $0x28] sm:$0xf]
  %v2315 = vld [vmem:[%s7 + $0x2c] sm:$0xf]
  %v2316 = vld [vmem:[%s7 + $0x30] sm:$0xf]
  %v2317 = vld [vmem:[%s7 + $0x34] sm:$0xf]
  %v2318 = vld [vmem:[%s7 + $0x38] sm:$0xf]
  %v2319 = vld [vmem:[%s7 + $0x3c] sm:$0xf]
  %v2320 = vld [vmem:[%s7 + $0x40] sm:$0xf]
  %v2321 = vld [vmem:[%s7 + $0x44] sm:$0xf]
  %v2322 = vld [vmem:[%s7 + $0x48] sm:$0xf]
  %v2323 = vld [vmem:[%s7 + $0x4c] sm:$0xf]
  %v2324 = vld [vmem:[%s7 + $0x50] sm:$0xf]
  %v2325 = vld [vmem:[%s7 + $0x54] sm:$0xf]
  %v2326 = vld [vmem:[%s7 + $0x58] sm:$0xf]
  %v2327 = vld [vmem:[%s7 + $0x5c] sm:$0xf]
  %v2328 = vld [vmem:[%s7 + $0x60] sm:$0xf]
  %v2329 = vld [vmem:[%s7 + $0x64] sm:$0xf]
  %v2330 = vld [vmem:[%s7 + $0x68] sm:$0xf]
  %v2331 = vld [vmem:[%s7 + $0x6c] sm:$0xf]
  %v2332 = vld [vmem:[%s7 + $0x70] sm:$0xf]
  %v2333 = vld [vmem:[%s7 + $0x74] sm:$0xf]
  %v2334 = vld [vmem:[%s7 + $0x78] sm:$0xf]
  %v2335 = vld [vmem:[%s7 + $0x7c] sm:$0xf]
  %v2337 = vlaneseq
  %v2338 = vshrl.u32 %v2337, 7
  %v2339 = vsub.s32 0, %v2338
  %v2340 = vrot.slane %v36, %v2339
  %v2374 = vunpack.c.l.b16 %v2304
  %v2375 = vunpack.c.l.b16 %v2305
  %v2376 = vunpack.c.l.b16 %v2306
  %v2377 = vunpack.c.l.b16 %v2307
  %v2378 = vunpack.c.l.b16 %v2308
  %v2379 = vunpack.c.l.b16 %v2309
  %v2380 = vunpack.c.l.b16 %v2310
  %v2381 = vunpack.c.l.b16 %v2311
  %v2382 = vunpack.c.l.b16 %v2312
  %v2383 = vunpack.c.l.b16 %v2313
  %v2384 = vunpack.c.l.b16 %v2314
  %v2385 = vunpack.c.l.b16 %v2315
  %v2386 = vunpack.c.l.b16 %v2316
  %v2387 = vunpack.c.l.b16 %v2317
  %v2388 = vunpack.c.l.b16 %v2318
  %v2389 = vunpack.c.l.b16 %v2319
  %v2390 = vunpack.c.l.b16 %v2320
  %v2391 = vunpack.c.l.b16 %v2321
  %v2392 = vunpack.c.l.b16 %v2322
  %v2393 = vunpack.c.l.b16 %v2323
  %v2394 = vunpack.c.l.b16 %v2324
  %v2395 = vunpack.c.l.b16 %v2325
  %v2396 = vunpack.c.l.b16 %v2326
  %v2397 = vunpack.c.l.b16 %v2327
  %v2398 = vunpack.c.l.b16 %v2328
  %v2399 = vunpack.c.l.b16 %v2329
  %v2400 = vunpack.c.l.b16 %v2330
  %v2401 = vunpack.c.l.b16 %v2331
  %v2402 = vunpack.c.l.b16 %v2332
  %v2403 = vunpack.c.l.b16 %v2333
  %v2404 = vunpack.c.l.b16 %v2334
  %v2405 = vunpack.c.l.b16 %v2335
  %v2406 = vpack.c.b16 %v2375, %v2374
  %v2407 = vpack.c.b16 %v2377, %v2376
  %v2408 = vpack.c.b16 %v2379, %v2378
  %v2409 = vpack.c.b16 %v2381, %v2380
  %v2410 = vpack.c.b16 %v2383, %v2382
  %v2411 = vpack.c.b16 %v2385, %v2384
  %v2412 = vpack.c.b16 %v2387, %v2386
  %v2413 = vpack.c.b16 %v2389, %v2388
  %v2414 = vpack.c.b16 %v2391, %v2390
  %v2415 = vpack.c.b16 %v2393, %v2392
  %v2416 = vpack.c.b16 %v2395, %v2394
  %v2417 = vpack.c.b16 %v2397, %v2396
  %v2418 = vpack.c.b16 %v2399, %v2398
  %v2419 = vpack.c.b16 %v2401, %v2400
  %v2420 = vpack.c.b16 %v2403, %v2402
  %v2421 = vpack.c.b16 %v2405, %v2404
  %2438 = vmatprep.subr.bf16.mxu0 0
  %2439 = vmatpush1.bf16.msra.mxu0 %v2406
  %2440 = vmatprep.subr.bf16.mxu0 0
  %2441 = vmatpush1.bf16.msra.mxu0 %v2407
  %2442 = vmatprep.subr.bf16.mxu0 0
  %2443 = vmatpush1.bf16.msra.mxu0 %v2408
  %2444 = vmatprep.subr.bf16.mxu0 0
  %2445 = vmatpush1.bf16.msra.mxu0 %v2409
  %2446 = vmatprep.subr.bf16.mxu0 0
  %2447 = vmatpush1.bf16.msra.mxu0 %v2410
  %2448 = vmatprep.subr.bf16.mxu0 0
  %2449 = vmatpush1.bf16.msra.mxu0 %v2411
  %2450 = vmatprep.subr.bf16.mxu0 0
  %2451 = vmatpush1.bf16.msra.mxu0 %v2412
  %2452 = vmatprep.subr.bf16.mxu0 0
  %2453 = vmatpush1.bf16.msra.mxu0 %v2413
  %2454 = vmatprep.subr.bf16.mxu0 0
  %2455 = vmatpush1.bf16.msra.mxu0 %v2414
  %2456 = vmatprep.subr.bf16.mxu0 0
  %2457 = vmatpush1.bf16.msra.mxu0 %v2415
  %2458 = vmatprep.subr.bf16.mxu0 0
  %2459 = vmatpush1.bf16.msra.mxu0 %v2416
  %2460 = vmatprep.subr.bf16.mxu0 0
  %2461 = vmatpush1.bf16.msra.mxu0 %v2417
  %2462 = vmatprep.subr.bf16.mxu0 0
  %2463 = vmatpush1.bf16.msra.mxu0 %v2418
  %2464 = vmatprep.subr.bf16.mxu0 0
  %2465 = vmatpush1.bf16.msra.mxu0 %v2419
  %2466 = vmatprep.subr.bf16.mxu0 0
  %2467 = vmatpush1.bf16.msra.mxu0 %v2420
  %2468 = vmatprep.subr.bf16.mxu0 0
  %2469 = vmatpush1.bf16.msra.mxu0 %v2421
  %2470 = vmatprep.mubr.bf16.mxu0 %v2303
  %2471 = vmatmul.mubr.bf16.gmra.mrb[0].mxu0 %v2302
  %v2472 = vpop.f32.mrb[0].mxu0
  %v2473 = vadd.f32 %v2340, %v2472
  %v2474 = vpop.f32.mrb[0].mxu0
  %v2475 = vpop.f32.mrb[0].mxu0
  %v2476 = vpop.f32.mrb[0].mxu0
  %2477 = vdwg.mxu0
  %2478 = vst [vmem:[%s9] sm:$0xff] %v2473
  // Predicated region
  $region38: #{global_local_network.1} parent=0 // pred_check
    _
  $region39: #{global_local_network.1} parent=0 // pred_check_branch
    %2480 = sbr.rel (0) target = $region41
  $region40: #{global_local_network.1} parent=0 // pred_region
    _
  $region41: #{global_local_network.1} parent=0 // pred_fallthru
    _
  // Predicated region
  $region42: #{global_local_network.1} parent=0 // pred_check
    _
  $region43: #{global_local_network.1} parent=0 // pred_check_branch
    %2482 = sbr.rel (0) target = $region45
  $region44: #{global_local_network.1} parent=0 // pred_region
    _
  $region45: #{global_local_network.1} parent=0 // pred_fallthru
    _

</llo_original>
